<compile_context>
chip_gen: v6e
topology: v6e:2x2x1
jax: 0.10.0
libtpu: 0.0.40
codegen_flags: <defaults>
</compile_context>

<pallas_src>
import numpy as np
import jax
import jax.numpy as jnp
from jax import lax
from jax.experimental import pallas as pl
from jax.experimental.pallas import tpu as pltpu


# ------------------ host-side constants: conv gather matrices -----------------

def _conv_gather_cat(H, W):
    """(H*W, 9*Ho*Wo) 0/1 selection matrix for a 3x3 / stride-2 / pad-1 conv.

    Column index is t*Pout + p with tap t = kh*3 + kw and p = ho*Wo + wo:
    (x @ S)[:, t*Pout + p] == x[:, hi*W + wi] with hi = 2*ho + kh - 1,
    wi = 2*wo + kw - 1, and 0 where (hi, wi) falls in the zero padding.
    Entries (0/1) are exact in bfloat16, so the gather itself is lossless.
    """
    Ho, Wo = H // 2, W // 2
    S = np.zeros((H * W, 9, Ho * Wo), np.float32)
    for kh in range(3):
        for kw in range(3):
            t = kh * 3 + kw
            for ho in range(Ho):
                hi = 2 * ho + kh - 1
                if hi < 0 or hi >= H:
                    continue
                for wo in range(Wo):
                    wi = 2 * wo + kw - 1
                    if 0 <= wi < W:
                        S[hi * W + wi, t, ho * Wo + wo] = 1.0
    return jnp.asarray(S.reshape(H * W, 9 * Ho * Wo), jnp.bfloat16)


# -------------------------------- fused kernel --------------------------------

def _boxblock_kernel(x_ref, s1_ref, w1_ref, s2_ref, w2_ref,
                     fw1_ref, fb1_ref, fw2_ref, fb2_ref, fw3_ref, fb3_ref,
                     o_ref):
    """Whole BoxBlock forward for one batch block, entirely in VMEM.

    Activation layout: rows = (batch, channel) pairs on sublanes, flattened
    spatial on lanes.
      x_ref  : (nb*Cin, H*W)      packed NCHW input
      s*_ref : (P_in, 9*P_out)    concatenated 0/1 tap-selection matrices (bf16)
      w*_ref : (Cout, 9*Cin)      tap-major packed conv weights (bf16)
      fw*_ref: pre-transposed Linear weights (bf16); fb*_ref: biases (f32)
      o_ref  : (nb, 8)
    """
    f32, bf16 = jnp.float32, jnp.bfloat16

    c1 = w1_ref.shape[0]
    cin = w1_ref.shape[1] // 9
    c2 = w2_ref.shape[0]
    p1 = s1_ref.shape[1] // 9
    p2 = s2_ref.shape[1] // 9
    nb = x_ref.shape[0] // cin          # batch elements in this grid step

    def conv_in_relu(inp2d, s_ref, w_ref, cin_l, pout):
        """Conv(3x3,s2,p1) + InstanceNorm2d(affine=False) + ReLU, batch-packed.

        inp2d: (nb*cin_l, Pin), rows are (batch, channel); returns (nb*cout, pout).
        """
        w = w_ref[...]                                          # (cout, 9*cin_l) bf16
        # 1) gather: ONE wide MXU dot against the 0/1 selection matrix.
        #    Each column selects at most one input element -> result is an
        #    exact copy of the (bf16) input values, accumulated in f32.
        g = jnp.dot(inp2d.astype(bf16), s_ref[...],
                    preferred_element_type=f32)                 # (nb*cin_l, 9*pout)
        outs = []
        for n in range(nb):                                     # static unroll, nb tiny
            gn = g[n * cin_l:(n + 1) * cin_l, :]                # (cin_l, 9*pout)
            # 2) regroup lanes (tap, pos) -> contraction rows (tap, chan):
            #    9 static lane slices + one concat (cheap VMEM copies, no MXU,
            #    no reliance on cross-lane reshapes).
            xg = jnp.concatenate(
                [gn[:, t * pout:(t + 1) * pout] for t in range(9)],
                axis=0)                                         # (9*cin_l, pout)
            # 3) apply: ONE dot with the tap-major packed conv weight.
            outs.append(jnp.dot(w, xg.astype(bf16),
                                preferred_element_type=f32))    # (cout, pout)
        y = jnp.concatenate(outs, axis=0)                       # (nb*cout, pout)
        # InstanceNorm2d(affine=False, eps=1e-5) + ReLU, per (batch, channel)
        # row over the spatial lanes.  Conv bias is omitted on purpose: a
        # per-channel constant is cancelled exactly by the mean subtraction.
        # Two-pass variance for accuracy.
        m = jnp.mean(y, axis=1, keepdims=True)
        d = y - m
        v = jnp.mean(d * d, axis=1, keepdims=True)
        return jnp.maximum(d * lax.rsqrt(v + 1e-5), 0.0)

    x = x_ref[...]                                              # (nb*Cin, H*W) f32
    y1 = conv_in_relu(x, s1_ref, w1_ref, cin, p1)               # (nb*C1, P1)
    y2 = conv_in_relu(y1, s2_ref, w2_ref, c1, p2)               # (nb*C2, P2)

    # torch's y.view(N, -1) on NCHW: per batch element, concatenate channel
    # rows along the lane axis -> (nb, C2*P2), column index c*P2 + p.
    flat = []
    for n in range(nb):
        yn = y2[n * c2:(n + 1) * c2, :]                         # (C2, P2)
        flat.append(jnp.concatenate([yn[c:c + 1, :] for c in range(c2)],
                                    axis=1))                    # (1, C2*P2)
    yf = jnp.concatenate(flat, axis=0)                          # (nb, C2*P2)

    # model_tail: Linear(512) -> Tanh -> Linear(64) -> Tanh -> Linear(8),
    # each as ONE dot batched over nb.
    h = jnp.tanh(jnp.dot(yf.astype(bf16), fw1_ref[...],
                         preferred_element_type=f32) + fb1_ref[...])
    h = jnp.tanh(jnp.dot(h.astype(bf16), fw2_ref[...],
                         preferred_element_type=f32) + fb2_ref[...])
    out = jnp.dot(h.astype(bf16), fw3_ref[...],
                  preferred_element_type=f32) + fb3_ref[...]
    o_ref[...] = out.astype(o_ref.dtype)


# ---------------------------------- wrapper ------------------------------------

def _const_spec(arr):
    """Full-array block that stays resident across the (batch-block) grid."""
    zeros = (0,) * arr.ndim
    return pl.BlockSpec(arr.shape, lambda i, _z=zeros: _z)


def box_block_forward(kp, x_nchw, *, batch_block=None):
    """Fused Pallas implementation of BoxBlock.forward.  x_nchw: (N, Cin, H, W).

    By default the whole batch is packed into one grid step (best on the
    single-TensorCore v5e/v6e).  On v7x with larger batches, pass
    batch_block=N//2 so the parallel grid axis puts one block per TensorCore.
    """
    N, Cin, H, W = x_nchw.shape
    nb = N if batch_block is None else batch_block
    assert N % nb == 0
    x2d = x_nchw.reshape(N * Cin, H * W)        # host-side view; batch on sublanes

    weight_names = ("s1", "w1", "s2", "w2",
                    "fw1", "fb1", "fw2", "fb2", "fw3", "fb3")
    weights = [kp[k] for k in weight_names]
    n_out = kp["fw3"].shape[1]

    out = pl.pallas_call(
        _boxblock_kernel,
        out_shape=jax.ShapeDtypeStruct((N, n_out), jnp.float32),
        grid=(N // nb,),
        in_specs=[pl.BlockSpec((nb * Cin, H * W), lambda i: (i, 0))]
                 + [_const_spec(w) for w in weights],
        out_specs=pl.BlockSpec((nb, n_out), lambda i: (i, 0)),
        compiler_params=pltpu.CompilerParams(
            dimension_semantics=("parallel",)),
    )(x2d, *weights)
    return out


# --------------------------- reference (plain JAX, f32) ------------------------

def box_block_reference(pt, x_nchw):
    def conv(x, w, b):
        y = lax.conv_general_dilated(
            x, w, window_strides=(2, 2), padding=((1, 1), (1, 1)),
            dimension_numbers=("NCHW", "OIHW", "NCHW"))
        return y + b[None, :, None, None]

    def instnorm_relu(y):
        mean = jnp.mean(y, axis=(2, 3), keepdims=True)
        var = jnp.mean(jnp.square(y - mean), axis=(2, 3), keepdims=True)
        return jnp.maximum((y - mean) * lax.rsqrt(var + 1e-5), 0.0)

    y = instnorm_relu(conv(x_nchw, pt["cw1"], pt["cb1"]))
    y = instnorm_relu(conv(y, pt["cw2"], pt["cb2"]))
    y = y.reshape(y.shape[0], -1)
    y = jnp.tanh(y @ pt["lw1"].T + pt["lb1"])
    y = jnp.tanh(y @ pt["lw2"].T + pt["lb2"])
    return y @ pt["lw3"].T + pt["lb3"]


# --------------------------------- parameters ----------------------------------

def init_torch_params(key, input_nc, ngf, im_size):
    """Deterministic synthetic parameters in PyTorch layouts."""
    ks = jax.random.split(key, 10)
    c1o, c2o = ngf, ngf // 2
    f_in = (im_size // 4) ** 2 * c2o

    def w(k, shape, fan_in):
        return jax.random.normal(k, shape, jnp.float32) / jnp.sqrt(fan_in)

    return {
        "cw1": w(ks[0], (c1o, input_nc, 3, 3), input_nc * 9),
        "cb1": 0.1 * jax.random.normal(ks[1], (c1o,), jnp.float32),
        "cw2": w(ks[2], (c2o, c1o, 3, 3), c1o * 9),
        "cb2": 0.1 * jax.random.normal(ks[3], (c2o,), jnp.float32),
        "lw1": w(ks[4], (512, f_in), f_in),
        "lb1": 0.1 * jax.random.normal(ks[5], (512,), jnp.float32),
        "lw2": w(ks[6], (64, 512), 512),
        "lb2": 0.1 * jax.random.normal(ks[7], (64,), jnp.float32),
        "lw3": w(ks[8], (8, 64), 64),
        "lb3": 0.1 * jax.random.normal(ks[9], (8,), jnp.float32),
    }


def to_kernel_params(pt, im_size):
    """Convert PyTorch-layout params into the fused kernel's packed layouts."""
    H1 = im_size // 2
    bf16 = jnp.bfloat16

    def conv_w_cat(w):
        # (O, I, 3, 3) -> (O, 9*I), tap-major: k = (kh*3 + kw)*I + i.
        o, i = w.shape[0], w.shape[1]
        return jnp.transpose(w, (0, 2, 3, 1)).reshape(o, 9 * i).astype(bf16)

    # TODO(synk): norm_layer is assumed to be affine-free InstanceNorm2d; a
    # BatchNorm or affine-IN variant would need running stats / scale-shift
    # params and would invalidate dropping the conv biases (cb1/cb2), which are
    # intentionally omitted here because the mean subtraction cancels them.
    return {
        "s1": _conv_gather_cat(im_size, im_size),   # (H*W,   9*P1)  bf16 0/1
        "w1": conv_w_cat(pt["cw1"]),                # (C1, 9*Cin)
        "s2": _conv_gather_cat(H1, H1),             # (P1,    9*P2)
        "w2": conv_w_cat(pt["cw2"]),                # (C2, 9*C1)
        "fw1": pt["lw1"].T.astype(bf16), "fb1": pt["lb1"][None, :],
        "fw2": pt["lw2"].T.astype(bf16), "fb2": pt["lb2"][None, :],
        "fw3": pt["lw3"].T.astype(bf16), "fb3": pt["lb3"][None, :],
    }


# ------------------------------------ main --------------------------------------

if __name__ == "__main__":
    N, input_nc, ngf, im_size = 2, 4, 8, 16      # small shapes, consistent w/ BoxBlock
    key = jax.random.PRNGKey(0)
    k_x, k_p = jax.random.split(key)

    x = jax.random.normal(k_x, (N, input_nc, im_size, im_size), jnp.float32)
    pt = init_torch_params(k_p, input_nc, ngf, im_size)
    kp = to_kernel_params(pt, im_size)

    out = jax.block_until_ready(box_block_forward(kp, x))
    ref = jax.block_until_ready(box_block_reference(pt, x))

    assert out.shape == (N, 8), out.shape
    assert jnp.allclose(out, ref, rtol=2e-2, atol=2e-2), (out, ref)
    print("KERNEL_OK")
</pallas_src>

<mosaic_0001>
module attributes {stable_mosaic.version = 11 : i64} {
  func.func @_boxblock_kernel(%arg0: i32, %arg1: memref<8x256xf32, #tpu.memory_space<vmem>>, %arg2: memref<256x576xbf16, #tpu.memory_space<vmem>>, %arg3: memref<8x36xbf16, #tpu.memory_space<vmem>>, %arg4: memref<64x144xbf16, #tpu.memory_space<vmem>>, %arg5: memref<4x72xbf16, #tpu.memory_space<vmem>>, %arg6: memref<64x512xbf16, #tpu.memory_space<vmem>>, %arg7: memref<1x512xf32, #tpu.memory_space<vmem>>, %arg8: memref<512x64xbf16, #tpu.memory_space<vmem>>, %arg9: memref<1x64xf32, #tpu.memory_space<vmem>>, %arg10: memref<64x8xbf16, #tpu.memory_space<vmem>>, %arg11: memref<1x8xf32, #tpu.memory_space<vmem>>, %arg12: memref<2x8xf32, #tpu.memory_space<vmem>>) attributes {dimension_semantics = [#tpu.dimension_semantics<parallel>], iteration_bounds = array<i64: 1>, scalar_prefetch = 0 : i64, scratch_operands = 0 : i64, tpu.core_type = #tpu.core_type<tc>, window_params = [{transform_indices = @transform_0, window_bounds = array<i64: 8, 256>}, {pipeline_mode = #tpu.pipeline_mode<synchronous>, transform_indices = @transform_1, window_bounds = array<i64: 256, 576>}, {pipeline_mode = #tpu.pipeline_mode<synchronous>, transform_indices = @transform_2, window_bounds = array<i64: 8, 36>}, {pipeline_mode = #tpu.pipeline_mode<synchronous>, transform_indices = @transform_3, window_bounds = array<i64: 64, 144>}, {pipeline_mode = #tpu.pipeline_mode<synchronous>, transform_indices = @transform_4, window_bounds = array<i64: 4, 72>}, {pipeline_mode = #tpu.pipeline_mode<synchronous>, transform_indices = @transform_5, window_bounds = array<i64: 64, 512>}, {pipeline_mode = #tpu.pipeline_mode<synchronous>, transform_indices = @transform_6, window_bounds = array<i64: 1, 512>}, {pipeline_mode = #tpu.pipeline_mode<synchronous>, transform_indices = @transform_7, window_bounds = array<i64: 512, 64>}, {pipeline_mode = #tpu.pipeline_mode<synchronous>, transform_indices = @transform_8, window_bounds = array<i64: 1, 64>}, {pipeline_mode = #tpu.pipeline_mode<synchronous>, transform_indices = @transform_9, window_bounds = array<i64: 64, 8>}, {pipeline_mode = #tpu.pipeline_mode<synchronous>, transform_indices = @transform_10, window_bounds = array<i64: 1, 8>}, {transform_indices = @transform_11, window_bounds = array<i64: 2, 8>}]} {
    %c0 = arith.constant 0 : index
    %c0_0 = arith.constant 0 : index
    %0 = vector.load %arg1[%c0, %c0_0] : memref<8x256xf32, #tpu.memory_space<vmem>>, vector<8x256xf32>
    %c0_1 = arith.constant 0 : index
    %c0_2 = arith.constant 0 : index
    %1 = vector.load %arg3[%c0_1, %c0_2] : memref<8x36xbf16, #tpu.memory_space<vmem>>, vector<8x36xbf16>
    %2 = arith.truncf %0 : vector<8x256xf32> to vector<8x256xbf16>
    %c0_3 = arith.constant 0 : index
    %c0_4 = arith.constant 0 : index
    %3 = vector.load %arg2[%c0_3, %c0_4] : memref<256x576xbf16, #tpu.memory_space<vmem>>, vector<256x576xbf16>
    %cst = arith.constant dense<0.000000e+00> : vector<8x576xf32>
    %4 = tpu.matmul %2, %3, %cst {dimension_numbers = #tpu.dot_dimension_numbers<[1], [0], [0], [1], [0, 0, 1, 1], [], []>} : vector<8x256xbf16>, vector<256x576xbf16>, vector<8x576xf32> -> vector<8x576xf32>
    %5 = vector.extract_strided_slice %4 {offsets = [0, 0], sizes = [4, 576], strides = [1, 1]} : vector<8x576xf32> to vector<4x576xf32>
    %6 = vector.extract_strided_slice %5 {offsets = [0, 0], sizes = [4, 64], strides = [1, 1]} : vector<4x576xf32> to vector<4x64xf32>
    %7 = vector.extract_strided_slice %5 {offsets = [0, 64], sizes = [4, 64], strides = [1, 1]} : vector<4x576xf32> to vector<4x64xf32>
    %8 = vector.extract_strided_slice %5 {offsets = [0, 128], sizes = [4, 64], strides = [1, 1]} : vector<4x576xf32> to vector<4x64xf32>
    %9 = vector.extract_strided_slice %5 {offsets = [0, 192], sizes = [4, 64], strides = [1, 1]} : vector<4x576xf32> to vector<4x64xf32>
    %10 = vector.extract_strided_slice %5 {offsets = [0, 256], sizes = [4, 64], strides = [1, 1]} : vector<4x576xf32> to vector<4x64xf32>
    %11 = vector.extract_strided_slice %5 {offsets = [0, 320], sizes = [4, 64], strides = [1, 1]} : vector<4x576xf32> to vector<4x64xf32>
    %12 = vector.extract_strided_slice %5 {offsets = [0, 384], sizes = [4, 64], strides = [1, 1]} : vector<4x576xf32> to vector<4x64xf32>
    %13 = vector.extract_strided_slice %5 {offsets = [0, 448], sizes = [4, 64], strides = [1, 1]} : vector<4x576xf32> to vector<4x64xf32>
    %14 = vector.extract_strided_slice %5 {offsets = [0, 512], sizes = [4, 64], strides = [1, 1]} : vector<4x576xf32> to vector<4x64xf32>
    %15 = tpu.concatenate %6, %7, %8, %9, %10, %11, %12, %13, %14 in 0 : vector<4x64xf32>, vector<4x64xf32>, vector<4x64xf32>, vector<4x64xf32>, vector<4x64xf32>, vector<4x64xf32>, vector<4x64xf32>, vector<4x64xf32>, vector<4x64xf32> -> vector<36x64xf32>
    %16 = arith.truncf %15 : vector<36x64xf32> to vector<36x64xbf16>
    %cst_5 = arith.constant dense<0.000000e+00> : vector<8x64xf32>
    %17 = tpu.matmul %1, %16, %cst_5 {dimension_numbers = #tpu.dot_dimension_numbers<[1], [0], [0], [1], [0, 0, 1, 1], [], []>} : vector<8x36xbf16>, vector<36x64xbf16>, vector<8x64xf32> -> vector<8x64xf32>
    %18 = vector.extract_strided_slice %4 {offsets = [4, 0], sizes = [4, 576], strides = [1, 1]} : vector<8x576xf32> to vector<4x576xf32>
    %19 = vector.extract_strided_slice %18 {offsets = [0, 0], sizes = [4, 64], strides = [1, 1]} : vector<4x576xf32> to vector<4x64xf32>
    %20 = vector.extract_strided_slice %18 {offsets = [0, 64], sizes = [4, 64], strides = [1, 1]} : vector<4x576xf32> to vector<4x64xf32>
    %21 = vector.extract_strided_slice %18 {offsets = [0, 128], sizes = [4, 64], strides = [1, 1]} : vector<4x576xf32> to vector<4x64xf32>
    %22 = vector.extract_strided_slice %18 {offsets = [0, 192], sizes = [4, 64], strides = [1, 1]} : vector<4x576xf32> to vector<4x64xf32>
    %23 = vector.extract_strided_slice %18 {offsets = [0, 256], sizes = [4, 64], strides = [1, 1]} : vector<4x576xf32> to vector<4x64xf32>
    %24 = vector.extract_strided_slice %18 {offsets = [0, 320], sizes = [4, 64], strides = [1, 1]} : vector<4x576xf32> to vector<4x64xf32>
    %25 = vector.extract_strided_slice %18 {offsets = [0, 384], sizes = [4, 64], strides = [1, 1]} : vector<4x576xf32> to vector<4x64xf32>
    %26 = vector.extract_strided_slice %18 {offsets = [0, 448], sizes = [4, 64], strides = [1, 1]} : vector<4x576xf32> to vector<4x64xf32>
    %27 = vector.extract_strided_slice %18 {offsets = [0, 512], sizes = [4, 64], strides = [1, 1]} : vector<4x576xf32> to vector<4x64xf32>
    %28 = tpu.concatenate %19, %20, %21, %22, %23, %24, %25, %26, %27 in 0 : vector<4x64xf32>, vector<4x64xf32>, vector<4x64xf32>, vector<4x64xf32>, vector<4x64xf32>, vector<4x64xf32>, vector<4x64xf32>, vector<4x64xf32>, vector<4x64xf32> -> vector<36x64xf32>
    %29 = arith.truncf %28 : vector<36x64xf32> to vector<36x64xbf16>
    %cst_6 = arith.constant dense<0.000000e+00> : vector<8x64xf32>
    %30 = tpu.matmul %1, %29, %cst_6 {dimension_numbers = #tpu.dot_dimension_numbers<[1], [0], [0], [1], [0, 0, 1, 1], [], []>} : vector<8x36xbf16>, vector<36x64xbf16>, vector<8x64xf32> -> vector<8x64xf32>
    %31 = tpu.concatenate %17, %30 in 0 : vector<8x64xf32>, vector<8x64xf32> -> vector<16x64xf32>
    %cst_7 = arith.constant dense<0.000000e+00> : vector<16xf32>
    %32 = vector.multi_reduction <add>, %31, %cst_7 [1] : vector<16x64xf32> to vector<16xf32>
    %33 = vector.shape_cast %32 : vector<16xf32> to vector<16x1xf32>
    %cst_8 = arith.constant 6.400000e+01 : f32
    %34 = vector.broadcast %cst_8 : f32 to vector<16x1xf32>
    %35 = arith.divf %33, %34 : vector<16x1xf32>
    %36 = vector.broadcast %35 : vector<16x1xf32> to vector<16x64xf32>
    %37 = arith.subf %31, %36 : vector<16x64xf32>
    %38 = arith.mulf %37, %37 : vector<16x64xf32>
    %cst_9 = arith.constant dense<0.000000e+00> : vector<16xf32>
    %39 = vector.multi_reduction <add>, %38, %cst_9 [1] : vector<16x64xf32> to vector<16xf32>
    %40 = vector.shape_cast %39 : vector<16xf32> to vector<16x1xf32>
    %cst_10 = arith.constant 6.400000e+01 : f32
    %41 = vector.broadcast %cst_10 : f32 to vector<16x1xf32>
    %42 = arith.divf %40, %41 : vector<16x1xf32>
    %cst_11 = arith.constant 9.99999974E-6 : f32
    %43 = vector.broadcast %cst_11 : f32 to vector<16x1xf32>
    %44 = arith.addf %42, %43 : vector<16x1xf32>
    %45 = math.rsqrt %44 : vector<16x1xf32>
    %46 = vector.broadcast %45 : vector<16x1xf32> to vector<16x64xf32>
    %47 = arith.mulf %37, %46 : vector<16x64xf32>
    %cst_12 = arith.constant 0.000000e+00 : f32
    %48 = vector.broadcast %cst_12 : f32 to vector<16x64xf32>
    %49 = arith.maximumf %47, %48 : vector<16x64xf32>
    %c0_13 = arith.constant 0 : index
    %c0_14 = arith.constant 0 : index
    %50 = vector.load %arg5[%c0_13, %c0_14] : memref<4x72xbf16, #tpu.memory_space<vmem>>, vector<4x72xbf16>
    %51 = arith.truncf %49 : vector<16x64xf32> to vector<16x64xbf16>
    %c0_15 = arith.constant 0 : index
    %c0_16 = arith.constant 0 : index
    %52 = vector.load %arg4[%c0_15, %c0_16] : memref<64x144xbf16, #tpu.memory_space<vmem>>, vector<64x144xbf16>
    %cst_17 = arith.constant dense<0.000000e+00> : vector<16x144xf32>
    %53 = tpu.matmul %51, %52, %cst_17 {dimension_numbers = #tpu.dot_dimension_numbers<[1], [0], [0], [1], [0, 0, 1, 1], [], []>} : vector<16x64xbf16>, vector<64x144xbf16>, vector<16x144xf32> -> vector<16x144xf32>
    %54 = vector.extract_strided_slice %53 {offsets = [0, 0], sizes = [8, 144], strides = [1, 1]} : vector<16x144xf32> to vector<8x144xf32>
    %55 = vector.extract_strided_slice %54 {offsets = [0, 0], sizes = [8, 16], strides = [1, 1]} : vector<8x144xf32> to vector<8x16xf32>
    %56 = vector.extract_strided_slice %54 {offsets = [0, 16], sizes = [8, 16], strides = [1, 1]} : vector<8x144xf32> to vector<8x16xf32>
    %57 = vector.extract_strided_slice %54 {offsets = [0, 32], sizes = [8, 16], strides = [1, 1]} : vector<8x144xf32> to vector<8x16xf32>
    %58 = vector.extract_strided_slice %54 {offsets = [0, 48], sizes = [8, 16], strides = [1, 1]} : vector<8x144xf32> to vector<8x16xf32>
    %59 = vector.extract_strided_slice %54 {offsets = [0, 64], sizes = [8, 16], strides = [1, 1]} : vector<8x144xf32> to vector<8x16xf32>
    %60 = vector.extract_strided_slice %54 {offsets = [0, 80], sizes = [8, 16], strides = [1, 1]} : vector<8x144xf32> to vector<8x16xf32>
    %61 = vector.extract_strided_slice %54 {offsets = [0, 96], sizes = [8, 16], strides = [1, 1]} : vector<8x144xf32> to vector<8x16xf32>
    %62 = vector.extract_strided_slice %54 {offsets = [0, 112], sizes = [8, 16], strides = [1, 1]} : vector<8x144xf32> to vector<8x16xf32>
    %63 = vector.extract_strided_slice %54 {offsets = [0, 128], sizes = [8, 16], strides = [1, 1]} : vector<8x144xf32> to vector<8x16xf32>
    %64 = tpu.concatenate %55, %56, %57, %58, %59, %60, %61, %62, %63 in 0 : vector<8x16xf32>, vector<8x16xf32>, vector<8x16xf32>, vector<8x16xf32>, vector<8x16xf32>, vector<8x16xf32>, vector<8x16xf32>, vector<8x16xf32>, vector<8x16xf32> -> vector<72x16xf32>
    %65 = arith.truncf %64 : vector<72x16xf32> to vector<72x16xbf16>
    %cst_18 = arith.constant dense<0.000000e+00> : vector<4x16xf32>
    %66 = tpu.matmul %50, %65, %cst_18 {dimension_numbers = #tpu.dot_dimension_numbers<[1], [0], [0], [1], [0, 0, 1, 1], [], []>} : vector<4x72xbf16>, vector<72x16xbf16>, vector<4x16xf32> -> vector<4x16xf32>
    %67 = vector.extract_strided_slice %53 {offsets = [8, 0], sizes = [8, 144], strides = [1, 1]} : vector<16x144xf32> to vector<8x144xf32>
    %68 = vector.extract_strided_slice %67 {offsets = [0, 0], sizes = [8, 16], strides = [1, 1]} : vector<8x144xf32> to vector<8x16xf32>
    %69 = vector.extract_strided_slice %67 {offsets = [0, 16], sizes = [8, 16], strides = [1, 1]} : vector<8x144xf32> to vector<8x16xf32>
    %70 = vector.extract_strided_slice %67 {offsets = [0, 32], sizes = [8, 16], strides = [1, 1]} : vector<8x144xf32> to vector<8x16xf32>
    %71 = vector.extract_strided_slice %67 {offsets = [0, 48], sizes = [8, 16], strides = [1, 1]} : vector<8x144xf32> to vector<8x16xf32>
    %72 = vector.extract_strided_slice %67 {offsets = [0, 64], sizes = [8, 16], strides = [1, 1]} : vector<8x144xf32> to vector<8x16xf32>
    %73 = vector.extract_strided_slice %67 {offsets = [0, 80], sizes = [8, 16], strides = [1, 1]} : vector<8x144xf32> to vector<8x16xf32>
    %74 = vector.extract_strided_slice %67 {offsets = [0, 96], sizes = [8, 16], strides = [1, 1]} : vector<8x144xf32> to vector<8x16xf32>
    %75 = vector.extract_strided_slice %67 {offsets = [0, 112], sizes = [8, 16], strides = [1, 1]} : vector<8x144xf32> to vector<8x16xf32>
    %76 = vector.extract_strided_slice %67 {offsets = [0, 128], sizes = [8, 16], strides = [1, 1]} : vector<8x144xf32> to vector<8x16xf32>
    %77 = tpu.concatenate %68, %69, %70, %71, %72, %73, %74, %75, %76 in 0 : vector<8x16xf32>, vector<8x16xf32>, vector<8x16xf32>, vector<8x16xf32>, vector<8x16xf32>, vector<8x16xf32>, vector<8x16xf32>, vector<8x16xf32>, vector<8x16xf32> -> vector<72x16xf32>
    %78 = arith.truncf %77 : vector<72x16xf32> to vector<72x16xbf16>
    %cst_19 = arith.constant dense<0.000000e+00> : vector<4x16xf32>
    %79 = tpu.matmul %50, %78, %cst_19 {dimension_numbers = #tpu.dot_dimension_numbers<[1], [0], [0], [1], [0, 0, 1, 1], [], []>} : vector<4x72xbf16>, vector<72x16xbf16>, vector<4x16xf32> -> vector<4x16xf32>
    %80 = tpu.concatenate %66, %79 in 0 : vector<4x16xf32>, vector<4x16xf32> -> vector<8x16xf32>
    %cst_20 = arith.constant dense<0.000000e+00> : vector<8xf32>
    %81 = vector.multi_reduction <add>, %80, %cst_20 [1] : vector<8x16xf32> to vector<8xf32>
    %82 = vector.shape_cast %81 : vector<8xf32> to vector<8x1xf32>
    %cst_21 = arith.constant 1.600000e+01 : f32
    %83 = vector.broadcast %cst_21 : f32 to vector<8x1xf32>
    %84 = arith.divf %82, %83 : vector<8x1xf32>
    %85 = vector.broadcast %84 : vector<8x1xf32> to vector<8x16xf32>
    %86 = arith.subf %80, %85 : vector<8x16xf32>
    %87 = arith.mulf %86, %86 : vector<8x16xf32>
    %cst_22 = arith.constant dense<0.000000e+00> : vector<8xf32>
    %88 = vector.multi_reduction <add>, %87, %cst_22 [1] : vector<8x16xf32> to vector<8xf32>
    %89 = vector.shape_cast %88 : vector<8xf32> to vector<8x1xf32>
    %cst_23 = arith.constant 1.600000e+01 : f32
    %90 = vector.broadcast %cst_23 : f32 to vector<8x1xf32>
    %91 = arith.divf %89, %90 : vector<8x1xf32>
    %cst_24 = arith.constant 9.99999974E-6 : f32
    %92 = vector.broadcast %cst_24 : f32 to vector<8x1xf32>
    %93 = arith.addf %91, %92 : vector<8x1xf32>
    %94 = math.rsqrt %93 : vector<8x1xf32>
    %95 = vector.broadcast %94 : vector<8x1xf32> to vector<8x16xf32>
    %96 = arith.mulf %86, %95 : vector<8x16xf32>
    %cst_25 = arith.constant 0.000000e+00 : f32
    %97 = vector.broadcast %cst_25 : f32 to vector<8x16xf32>
    %98 = arith.maximumf %96, %97 : vector<8x16xf32>
    %99 = vector.extract_strided_slice %98 {offsets = [0, 0], sizes = [4, 16], strides = [1, 1]} : vector<8x16xf32> to vector<4x16xf32>
    %100 = vector.extract_strided_slice %99 {offsets = [0, 0], sizes = [1, 16], strides = [1, 1]} : vector<4x16xf32> to vector<1x16xf32>
    %101 = vector.extract_strided_slice %99 {offsets = [1, 0], sizes = [1, 16], strides = [1, 1]} : vector<4x16xf32> to vector<1x16xf32>
    %102 = vector.extract_strided_slice %99 {offsets = [2, 0], sizes = [1, 16], strides = [1, 1]} : vector<4x16xf32> to vector<1x16xf32>
    %103 = vector.extract_strided_slice %99 {offsets = [3, 0], sizes = [1, 16], strides = [1, 1]} : vector<4x16xf32> to vector<1x16xf32>
    %104 = tpu.concatenate %100, %101, %102, %103 in 1 : vector<1x16xf32>, vector<1x16xf32>, vector<1x16xf32>, vector<1x16xf32> -> vector<1x64xf32>
    %105 = vector.extract_strided_slice %98 {offsets = [4, 0], sizes = [4, 16], strides = [1, 1]} : vector<8x16xf32> to vector<4x16xf32>
    %106 = vector.extract_strided_slice %105 {offsets = [0, 0], sizes = [1, 16], strides = [1, 1]} : vector<4x16xf32> to vector<1x16xf32>
    %107 = vector.extract_strided_slice %105 {offsets = [1, 0], sizes = [1, 16], strides = [1, 1]} : vector<4x16xf32> to vector<1x16xf32>
    %108 = vector.extract_strided_slice %105 {offsets = [2, 0], sizes = [1, 16], strides = [1, 1]} : vector<4x16xf32> to vector<1x16xf32>
    %109 = vector.extract_strided_slice %105 {offsets = [3, 0], sizes = [1, 16], strides = [1, 1]} : vector<4x16xf32> to vector<1x16xf32>
    %110 = tpu.concatenate %106, %107, %108, %109 in 1 : vector<1x16xf32>, vector<1x16xf32>, vector<1x16xf32>, vector<1x16xf32> -> vector<1x64xf32>
    %111 = tpu.concatenate %104, %110 in 0 : vector<1x64xf32>, vector<1x64xf32> -> vector<2x64xf32>
    %112 = arith.truncf %111 : vector<2x64xf32> to vector<2x64xbf16>
    %c0_26 = arith.constant 0 : index
    %c0_27 = arith.constant 0 : index
    %113 = vector.load %arg6[%c0_26, %c0_27] : memref<64x512xbf16, #tpu.memory_space<vmem>>, vector<64x512xbf16>
    %cst_28 = arith.constant dense<0.000000e+00> : vector<2x512xf32>
    %114 = tpu.matmul %112, %113, %cst_28 {dimension_numbers = #tpu.dot_dimension_numbers<[1], [0], [0], [1], [0, 0, 1, 1], [], []>} : vector<2x64xbf16>, vector<64x512xbf16>, vector<2x512xf32> -> vector<2x512xf32>
    %c0_29 = arith.constant 0 : index
    %c0_30 = arith.constant 0 : index
    %115 = vector.load %arg7[%c0_29, %c0_30] : memref<1x512xf32, #tpu.memory_space<vmem>>, vector<1x512xf32>
    %116 = vector.broadcast %115 : vector<1x512xf32> to vector<2x512xf32>
    %117 = arith.addf %114, %116 : vector<2x512xf32>
    %118 = math.tanh %117 : vector<2x512xf32>
    %119 = arith.truncf %118 : vector<2x512xf32> to vector<2x512xbf16>
    %c0_31 = arith.constant 0 : index
    %c0_32 = arith.constant 0 : index
    %120 = vector.load %arg8[%c0_31, %c0_32] : memref<512x64xbf16, #tpu.memory_space<vmem>>, vector<512x64xbf16>
    %cst_33 = arith.constant dense<0.000000e+00> : vector<2x64xf32>
    %121 = tpu.matmul %119, %120, %cst_33 {dimension_numbers = #tpu.dot_dimension_numbers<[1], [0], [0], [1], [0, 0, 1, 1], [], []>} : vector<2x512xbf16>, vector<512x64xbf16>, vector<2x64xf32> -> vector<2x64xf32>
    %c0_34 = arith.constant 0 : index
    %c0_35 = arith.constant 0 : index
    %122 = vector.load %arg9[%c0_34, %c0_35] : memref<1x64xf32, #tpu.memory_space<vmem>>, vector<1x64xf32>
    %123 = vector.broadcast %122 : vector<1x64xf32> to vector<2x64xf32>
    %124 = arith.addf %121, %123 : vector<2x64xf32>
    %125 = math.tanh %124 : vector<2x64xf32>
    %126 = arith.truncf %125 : vector<2x64xf32> to vector<2x64xbf16>
    %c0_36 = arith.constant 0 : index
    %c0_37 = arith.constant 0 : index
    %127 = vector.load %arg10[%c0_36, %c0_37] : memref<64x8xbf16, #tpu.memory_space<vmem>>, vector<64x8xbf16>
    %cst_38 = arith.constant dense<0.000000e+00> : vector<2x8xf32>
    %128 = tpu.matmul %126, %127, %cst_38 {dimension_numbers = #tpu.dot_dimension_numbers<[1], [0], [0], [1], [0, 0, 1, 1], [], []>} : vector<2x64xbf16>, vector<64x8xbf16>, vector<2x8xf32> -> vector<2x8xf32>
    %c0_39 = arith.constant 0 : index
    %c0_40 = arith.constant 0 : index
    %129 = vector.load %arg11[%c0_39, %c0_40] : memref<1x8xf32, #tpu.memory_space<vmem>>, vector<1x8xf32>
    %130 = vector.broadcast %129 : vector<1x8xf32> to vector<2x8xf32>
    %131 = arith.addf %128, %130 : vector<2x8xf32>
    %c0_41 = arith.constant 0 : index
    %c0_42 = arith.constant 0 : index
    %132 = vector.load %arg12[%c0_41, %c0_42] : memref<2x8xf32, #tpu.memory_space<vmem>>, vector<2x8xf32>
    tpu.vector_store %arg12[%c0_41, %c0_42], %131 {strides = array<i32>} : memref<2x8xf32, #tpu.memory_space<vmem>>, vector<2x8xf32>,
    return
  }
  func.func @transform_0(%arg0: i32) -> (i32, i32) {
    %c0_i32 = arith.constant 0 : i32
    %c0_i32_0 = arith.constant 0 : i32
    return %arg0, %c0_i32 : i32, i32
  }
  func.func @transform_1(%arg0: i32) -> (i32, i32) {
    %c0_i32 = arith.constant 0 : i32
    %c0_i32_0 = arith.constant 0 : i32
    %c0_i32_1 = arith.constant 0 : i32
    return %c0_i32, %c0_i32_0 : i32, i32
  }
  func.func @transform_2(%arg0: i32) -> (i32, i32) {
    %c0_i32 = arith.constant 0 : i32
    %c0_i32_0 = arith.constant 0 : i32
    %c0_i32_1 = arith.constant 0 : i32
    return %c0_i32, %c0_i32_0 : i32, i32
  }
  func.func @transform_3(%arg0: i32) -> (i32, i32) {
    %c0_i32 = arith.constant 0 : i32
    %c0_i32_0 = arith.constant 0 : i32
    %c0_i32_1 = arith.constant 0 : i32
    return %c0_i32, %c0_i32_0 : i32, i32
  }
  func.func @transform_4(%arg0: i32) -> (i32, i32) {
    %c0_i32 = arith.constant 0 : i32
    %c0_i32_0 = arith.constant 0 : i32
    %c0_i32_1 = arith.constant 0 : i32
    return %c0_i32, %c0_i32_0 : i32, i32
  }
  func.func @transform_5(%arg0: i32) -> (i32, i32) {
    %c0_i32 = arith.constant 0 : i32
    %c0_i32_0 = arith.constant 0 : i32
    %c0_i32_1 = arith.constant 0 : i32
    return %c0_i32, %c0_i32_0 : i32, i32
  }
  func.func @transform_6(%arg0: i32) -> (i32, i32) {
    %c0_i32 = arith.constant 0 : i32
    %c0_i32_0 = arith.constant 0 : i32
    %c0_i32_1 = arith.constant 0 : i32
    return %c0_i32, %c0_i32_0 : i32, i32
  }
  func.func @transform_7(%arg0: i32) -> (i32, i32) {
    %c0_i32 = arith.constant 0 : i32
    %c0_i32_0 = arith.constant 0 : i32
    %c0_i32_1 = arith.constant 0 : i32
    return %c0_i32, %c0_i32_0 : i32, i32
  }
  func.func @transform_8(%arg0: i32) -> (i32, i32) {
    %c0_i32 = arith.constant 0 : i32
    %c0_i32_0 = arith.constant 0 : i32
    %c0_i32_1 = arith.constant 0 : i32
    return %c0_i32, %c0_i32_0 : i32, i32
  }
  func.func @transform_9(%arg0: i32) -> (i32, i32) {
    %c0_i32 = arith.constant 0 : i32
    %c0_i32_0 = arith.constant 0 : i32
    %c0_i32_1 = arith.constant 0 : i32
    return %c0_i32, %c0_i32_0 : i32, i32
  }
  func.func @transform_10(%arg0: i32) -> (i32, i32) {
    %c0_i32 = arith.constant 0 : i32
    %c0_i32_0 = arith.constant 0 : i32
    %c0_i32_1 = arith.constant 0 : i32
    return %c0_i32, %c0_i32_0 : i32, i32
  }
  func.func @transform_11(%arg0: i32) -> (i32, i32) {
    %c0_i32 = arith.constant 0 : i32
    %c0_i32_0 = arith.constant 0 : i32
    return %arg0, %c0_i32 : i32, i32
  }
}

</mosaic_0001>

<llo_original>
// kernel: tpu_custom_call.1
$region0: #{tpu_custom_call.1}
  #allocation0 [shape = 'u32[]', space=smem, size = 0x4, offset = 0x4, fixed_abs, tag = 'smem constant byte address 0x4 - core index']
  #allocation1 [shape = 'u32[144,128]{1,0:T(1,128)}', space=vmem, size = 0x12000, scoped, tag = 'internal scratch']
  %s0 = inlined_call_operand.vmem [shape: f32[8,256], index: 0, kind: input, shape index: {}]
  %s1 = inlined_call_operand.vmem [shape: bf16[256,576], index: 1, kind: input, shape index: {}]
  %s2 = inlined_call_operand.vmem [shape: bf16[8,36], index: 2, kind: input, shape index: {}]
  %s3 = inlined_call_operand.vmem [shape: bf16[64,144], index: 3, kind: input, shape index: {}]
  %s4 = inlined_call_operand.vmem [shape: bf16[4,72], index: 4, kind: input, shape index: {}]
  %s5 = inlined_call_operand.vmem [shape: bf16[64,512], index: 5, kind: input, shape index: {}]
  %s6 = inlined_call_operand.vmem [shape: f32[1,512], index: 6, kind: input, shape index: {}]
  %s7 = inlined_call_operand.vmem [shape: bf16[512,64], index: 7, kind: input, shape index: {}]
  %s8 = inlined_call_operand.vmem [shape: f32[1,64], index: 8, kind: input, shape index: {}]
  %s9 = inlined_call_operand.vmem [shape: bf16[64,8], index: 9, kind: input, shape index: {}]
  %s10 = inlined_call_operand.vmem [shape: f32[1,8], index: 10, kind: input, shape index: {}]
  %s11 = inlined_call_operand.hbm [shape: f32[2,8], index: 11, kind: output, shape index: {}]
  %s12 = sld [smem:[#allocation0]]
  $region54: #{tpu_custom_call.1} parent=0
    _
  %s14 = ssub.s32 1, %s12
  %s15 = scalar_select 0, %s14, %s12
  $region1: #{tpu_custom_call.1} parent=0
    #allocation2 [shape = 'u8[1024]{0}', space=vmem, size = 0x400, scoped, tag = 'output window, operand 0, single buffered']
    #allocation3 [shape = 's32[1]{0}', space=sflag, size = 0x4, scoped, tag = 'scoped memory for tpu_custom_call.1']
    %16 = vsyncpa [#allocation3], 0
    // Predicated region
    $region2: #{tpu_custom_call.1} parent=1 // pred_check
      _
    $region3: #{tpu_custom_call.1} parent=1 // pred_check_branch
      %18 = sbr.rel (0) target = $region5
    $region4: #{tpu_custom_call.1} parent=1 // pred_region
      _
    $region5: #{tpu_custom_call.1} parent=1 // pred_fallthru
      _
    // Predicated region
    $region6: #{tpu_custom_call.1} parent=1 // pred_check
      _
    $region7: #{tpu_custom_call.1} parent=1 // pred_check_branch
      %20 = sbr.rel (0) target = $region9
    $region8: #{tpu_custom_call.1} parent=1 // pred_region
      _
    $region9: #{tpu_custom_call.1} parent=1 // pred_fallthru
      _
    // Predicated region
    $region10: #{tpu_custom_call.1} parent=1 // pred_check
      _
    $region11: #{tpu_custom_call.1} parent=1 // pred_check_branch
      %22 = sbr.rel (0) target = $region13
    $region12: #{tpu_custom_call.1} parent=1 // pred_region
      _
    $region13: #{tpu_custom_call.1} parent=1 // pred_fallthru
      _
    // Predicated region
    $region14: #{tpu_custom_call.1} parent=1 // pred_check
      _
    $region15: #{tpu_custom_call.1} parent=1 // pred_check_branch
      %24 = sbr.rel (0) target = $region17
    $region16: #{tpu_custom_call.1} parent=1 // pred_region
      _
    $region17: #{tpu_custom_call.1} parent=1 // pred_fallthru
      _
    // Predicated region
    $region18: #{tpu_custom_call.1} parent=1 // pred_check
      _
    $region19: #{tpu_custom_call.1} parent=1 // pred_check_branch
      %26 = sbr.rel (0) target = $region21
    $region20: #{tpu_custom_call.1} parent=1 // pred_region
      _
    $region21: #{tpu_custom_call.1} parent=1 // pred_fallthru
      _
    // Predicated region
    $region22: #{tpu_custom_call.1} parent=1 // pred_check
      _
    $region23: #{tpu_custom_call.1} parent=1 // pred_check_branch
      %28 = sbr.rel (0) target = $region25
    $region24: #{tpu_custom_call.1} parent=1 // pred_region
      _
    $region25: #{tpu_custom_call.1} parent=1 // pred_fallthru
      _
    // Predicated region
    $region26: #{tpu_custom_call.1} parent=1 // pred_check
      _
    $region27: #{tpu_custom_call.1} parent=1 // pred_check_branch
      %30 = sbr.rel (0) target = $region29
    $region28: #{tpu_custom_call.1} parent=1 // pred_region
      _
    $region29: #{tpu_custom_call.1} parent=1 // pred_fallthru
      _
    // Predicated region
    $region30: #{tpu_custom_call.1} parent=1 // pred_check
      _
    $region31: #{tpu_custom_call.1} parent=1 // pred_check_branch
      %32 = sbr.rel (0) target = $region33
    $region32: #{tpu_custom_call.1} parent=1 // pred_region
      _
    $region33: #{tpu_custom_call.1} parent=1 // pred_fallthru
      _
    // Predicated region
    $region34: #{tpu_custom_call.1} parent=1 // pred_check
      _
    $region35: #{tpu_custom_call.1} parent=1 // pred_check_branch
      %34 = sbr.rel (0) target = $region37
    $region36: #{tpu_custom_call.1} parent=1 // pred_region
      _
    $region37: #{tpu_custom_call.1} parent=1 // pred_fallthru
      _
    // Predicated region
    $region38: #{tpu_custom_call.1} parent=1 // pred_check
      _
    $region39: #{tpu_custom_call.1} parent=1 // pred_check_branch
      %36 = sbr.rel (0) target = $region41
    $region40: #{tpu_custom_call.1} parent=1 // pred_region
      _
    $region41: #{tpu_custom_call.1} parent=1 // pred_fallthru
      _
    // Predicated region
    $region42: #{tpu_custom_call.1} parent=1 // pred_check
      _
    $region43: #{tpu_custom_call.1} parent=1 // pred_check_branch
      %38 = sbr.rel (0) target = $region45
    $region44: #{tpu_custom_call.1} parent=1 // pred_region
      _
    $region45: #{tpu_custom_call.1} parent=1 // pred_fallthru
      _
    %v40 = vld [vmem:[%s0] sm:$0xff]
    %v41 = vld [vmem:[%s0 + $0x8] sm:$0xff]
    %v42 = vld [vmem:[%s2] sm:$0xf]
    %v43 = vpack.c.bf16 %v40, %v40
    %v44 = vpack.c.bf16 %v41, %v41
    %v45 = vld [vmem:[%s1] sm:$0xff]
    %v46 = vld [vmem:[%s1 + $0x8] sm:$0xff]
    %v47 = vld [vmem:[%s1 + $0x10] sm:$0xf]
    %v48 = vld [vmem:[%s1 + $0x14] sm:$0xff]
    %v49 = vld [vmem:[%s1 + $0x1c] sm:$0xff]
    %v50 = vld [vmem:[%s1 + $0x24] sm:$0xf]
    %v51 = vld [vmem:[%s1 + $0x28] sm:$0xff]
    %v52 = vld [vmem:[%s1 + $0x30] sm:$0xff]
    %v53 = vld [vmem:[%s1 + $0x38] sm:$0xf]
    %v54 = vld [vmem:[%s1 + $0x3c] sm:$0xff]
    %v55 = vld [vmem:[%s1 + $0x44] sm:$0xff]
    %v56 = vld [vmem:[%s1 + $0x4c] sm:$0xf]
    %v57 = vld [vmem:[%s1 + $0x50] sm:$0xff]
    %v58 = vld [vmem:[%s1 + $0x58] sm:$0xff]
    %v59 = vld [vmem:[%s1 + $0x60] sm:$0xf]
    %v60 = vld [vmem:[%s1 + $0x64] sm:$0xff]
    %v61 = vld [vmem:[%s1 + $0x6c] sm:$0xff]
    %v62 = vld [vmem:[%s1 + $0x74] sm:$0xf]
    %v63 = vld [vmem:[%s1 + $0x78] sm:$0xff]
    %v64 = vld [vmem:[%s1 + $0x80] sm:$0xff]
    %v65 = vld [vmem:[%s1 + $0x88] sm:$0xf]
    %v66 = vld [vmem:[%s1 + $0x8c] sm:$0xff]
    %v67 = vld [vmem:[%s1 + $0x94] sm:$0xff]
    %v68 = vld [vmem:[%s1 + $0x9c] sm:$0xf]
    %v69 = vld [vmem:[%s1 + $0xa0] sm:$0xff]
    %v70 = vld [vmem:[%s1 + $0xa8] sm:$0xff]
    %v71 = vld [vmem:[%s1 + $0xb0] sm:$0xf]
    %v72 = vld [vmem:[%s1 + $0xb4] sm:$0xff]
    %v73 = vld [vmem:[%s1 + $0xbc] sm:$0xff]
    %v74 = vld [vmem:[%s1 + $0xc4] sm:$0xf]
    %v75 = vld [vmem:[%s1 + $0xc8] sm:$0xff]
    %v76 = vld [vmem:[%s1 + $0xd0] sm:$0xff]
    %v77 = vld [vmem:[%s1 + $0xd8] sm:$0xf]
    %v78 = vld [vmem:[%s1 + $0xdc] sm:$0xff]
    %v79 = vld [vmem:[%s1 + $0xe4] sm:$0xff]
    %v80 = vld [vmem:[%s1 + $0xec] sm:$0xf]
    %v81 = vld [vmem:[%s1 + $0xf0] sm:$0xff]
    %v82 = vld [vmem:[%s1 + $0xf8] sm:$0xff]
    %v83 = vld [vmem:[%s1 + $0x100] sm:$0xf]
    %v84 = vld [vmem:[%s1 + $0x104] sm:$0xff]
    %v85 = vld [vmem:[%s1 + $0x10c] sm:$0xff]
    %v86 = vld [vmem:[%s1 + $0x114] sm:$0xf]
    %v87 = vld [vmem:[%s1 + $0x118] sm:$0xff]
    %v88 = vld [vmem:[%s1 + $0x120] sm:$0xff]
    %v89 = vld [vmem:[%s1 + $0x128] sm:$0xf]
    %v90 = vld [vmem:[%s1 + $0x12c] sm:$0xff]
    %v91 = vld [vmem:[%s1 + $0x134] sm:$0xff]
    %v92 = vld [vmem:[%s1 + $0x13c] sm:$0xf]
    %v93 = vld [vmem:[%s1 + $0x140] sm:$0xff]
    %v94 = vld [vmem:[%s1 + $0x148] sm:$0xff]
    %v95 = vld [vmem:[%s1 + $0x150] sm:$0xf]
    %v96 = vld [vmem:[%s1 + $0x154] sm:$0xff]
    %v97 = vld [vmem:[%s1 + $0x15c] sm:$0xff]
    %v98 = vld [vmem:[%s1 + $0x164] sm:$0xf]
    %v99 = vld [vmem:[%s1 + $0x168] sm:$0xff]
    %v100 = vld [vmem:[%s1 + $0x170] sm:$0xff]
    %v101 = vld [vmem:[%s1 + $0x178] sm:$0xf]
    %v102 = vld [vmem:[%s1 + $0x17c] sm:$0xff]
    %v103 = vld [vmem:[%s1 + $0x184] sm:$0xff]
    %v104 = vld [vmem:[%s1 + $0x18c] sm:$0xf]
    %v105 = vld [vmem:[%s1 + $0x190] sm:$0xff]
    %v106 = vld [vmem:[%s1 + $0x198] sm:$0xff]
    %v107 = vld [vmem:[%s1 + $0x1a0] sm:$0xf]
    %v108 = vld [vmem:[%s1 + $0x1a4] sm:$0xff]
    %v109 = vld [vmem:[%s1 + $0x1ac] sm:$0xff]
    %v110 = vld [vmem:[%s1 + $0x1b4] sm:$0xf]
    %v111 = vld [vmem:[%s1 + $0x1b8] sm:$0xff]
    %v112 = vld [vmem:[%s1 + $0x1c0] sm:$0xff]
    %v113 = vld [vmem:[%s1 + $0x1c8] sm:$0xf]
    %v114 = vld [vmem:[%s1 + $0x1cc] sm:$0xff]
    %v115 = vld [vmem:[%s1 + $0x1d4] sm:$0xff]
    %v116 = vld [vmem:[%s1 + $0x1dc] sm:$0xf]
    %v117 = vld [vmem:[%s1 + $0x1e0] sm:$0xff]
    %v118 = vld [vmem:[%s1 + $0x1e8] sm:$0xff]
    %v119 = vld [vmem:[%s1 + $0x1f0] sm:$0xf]
    %v120 = vld [vmem:[%s1 + $0x1f4] sm:$0xff]
    %v121 = vld [vmem:[%s1 + $0x1fc] sm:$0xff]
    %v122 = vld [vmem:[%s1 + $0x204] sm:$0xf]
    %v123 = vld [vmem:[%s1 + $0x208] sm:$0xff]
    %v124 = vld [vmem:[%s1 + $0x210] sm:$0xff]
    %v125 = vld [vmem:[%s1 + $0x218] sm:$0xf]
    %v126 = vld [vmem:[%s1 + $0x21c] sm:$0xff]
    %v127 = vld [vmem:[%s1 + $0x224] sm:$0xff]
    %v128 = vld [vmem:[%s1 + $0x22c] sm:$0xf]
    %v129 = vld [vmem:[%s1 + $0x230] sm:$0xff]
    %v130 = vld [vmem:[%s1 + $0x238] sm:$0xff]
    %v131 = vld [vmem:[%s1 + $0x240] sm:$0xf]
    %v132 = vld [vmem:[%s1 + $0x244] sm:$0xff]
    %v133 = vld [vmem:[%s1 + $0x24c] sm:$0xff]
    %v134 = vld [vmem:[%s1 + $0x254] sm:$0xf]
    %v135 = vld [vmem:[%s1 + $0x258] sm:$0xff]
    %v136 = vld [vmem:[%s1 + $0x260] sm:$0xff]
    %v137 = vld [vmem:[%s1 + $0x268] sm:$0xf]
    %v138 = vld [vmem:[%s1 + $0x26c] sm:$0xff]
    %v139 = vld [vmem:[%s1 + $0x274] sm:$0xff]
    %v140 = vld [vmem:[%s1 + $0x27c] sm:$0xf]
    %v237 = vunpack.c.l.b16 %v45
    %v238 = vunpack.c.h.b16 %v45
    %v239 = vunpack.c.l.b16 %v46
    %v240 = vunpack.c.h.b16 %v46
    %v241 = vunpack.c.l.b16 %v47
    %v242 = vunpack.c.l.b16 %v48
    %v243 = vunpack.c.h.b16 %v48
    %v244 = vunpack.c.l.b16 %v49
    %v245 = vunpack.c.h.b16 %v49
    %v246 = vunpack.c.l.b16 %v50
    %v247 = vunpack.c.l.b16 %v51
    %v248 = vunpack.c.h.b16 %v51
    %v249 = vunpack.c.l.b16 %v52
    %v250 = vunpack.c.h.b16 %v52
    %v251 = vunpack.c.l.b16 %v53
    %v252 = vunpack.c.l.b16 %v54
    %v253 = vunpack.c.h.b16 %v54
    %v254 = vunpack.c.l.b16 %v55
    %v255 = vunpack.c.h.b16 %v55
    %v256 = vunpack.c.l.b16 %v56
    %v257 = vunpack.c.l.b16 %v57
    %v258 = vunpack.c.h.b16 %v57
    %v259 = vunpack.c.l.b16 %v58
    %v260 = vunpack.c.h.b16 %v58
    %v261 = vunpack.c.l.b16 %v59
    %v262 = vunpack.c.l.b16 %v60
    %v263 = vunpack.c.h.b16 %v60
    %v264 = vunpack.c.l.b16 %v61
    %v265 = vunpack.c.h.b16 %v61
    %v266 = vunpack.c.l.b16 %v62
    %v267 = vunpack.c.l.b16 %v63
    %v268 = vunpack.c.h.b16 %v63
    %v269 = vunpack.c.l.b16 %v64
    %v270 = vunpack.c.h.b16 %v64
    %v271 = vunpack.c.l.b16 %v65
    %v272 = vunpack.c.l.b16 %v66
    %v273 = vunpack.c.h.b16 %v66
    %v274 = vunpack.c.l.b16 %v67
    %v275 = vunpack.c.h.b16 %v67
    %v276 = vunpack.c.l.b16 %v68
    %v277 = vunpack.c.l.b16 %v69
    %v278 = vunpack.c.h.b16 %v69
    %v279 = vunpack.c.l.b16 %v70
    %v280 = vunpack.c.h.b16 %v70
    %v281 = vunpack.c.l.b16 %v71
    %v282 = vunpack.c.l.b16 %v72
    %v283 = vunpack.c.h.b16 %v72
    %v284 = vunpack.c.l.b16 %v73
    %v285 = vunpack.c.h.b16 %v73
    %v286 = vunpack.c.l.b16 %v74
    %v287 = vunpack.c.l.b16 %v75
    %v288 = vunpack.c.h.b16 %v75
    %v289 = vunpack.c.l.b16 %v76
    %v290 = vunpack.c.h.b16 %v76
    %v291 = vunpack.c.l.b16 %v77
    %v292 = vunpack.c.l.b16 %v78
    %v293 = vunpack.c.h.b16 %v78
    %v294 = vunpack.c.l.b16 %v79
    %v295 = vunpack.c.h.b16 %v79
    %v296 = vunpack.c.l.b16 %v80
    %v297 = vunpack.c.l.b16 %v81
    %v298 = vunpack.c.h.b16 %v81
    %v299 = vunpack.c.l.b16 %v82
    %v300 = vunpack.c.h.b16 %v82
    %v301 = vunpack.c.l.b16 %v83
    %v302 = vunpack.c.l.b16 %v84
    %v303 = vunpack.c.h.b16 %v84
    %v304 = vunpack.c.l.b16 %v85
    %v305 = vunpack.c.h.b16 %v85
    %v306 = vunpack.c.l.b16 %v86
    %v307 = vunpack.c.l.b16 %v87
    %v308 = vunpack.c.h.b16 %v87
    %v309 = vunpack.c.l.b16 %v88
    %v310 = vunpack.c.h.b16 %v88
    %v311 = vunpack.c.l.b16 %v89
    %v312 = vunpack.c.l.b16 %v90
    %v313 = vunpack.c.h.b16 %v90
    %v314 = vunpack.c.l.b16 %v91
    %v315 = vunpack.c.h.b16 %v91
    %v316 = vunpack.c.l.b16 %v92
    %v317 = vunpack.c.l.b16 %v93
    %v318 = vunpack.c.h.b16 %v93
    %v319 = vunpack.c.l.b16 %v94
    %v320 = vunpack.c.h.b16 %v94
    %v321 = vunpack.c.l.b16 %v95
    %v322 = vunpack.c.l.b16 %v96
    %v323 = vunpack.c.h.b16 %v96
    %v324 = vunpack.c.l.b16 %v97
    %v325 = vunpack.c.h.b16 %v97
    %v326 = vunpack.c.l.b16 %v98
    %v327 = vunpack.c.l.b16 %v99
    %v328 = vunpack.c.h.b16 %v99
    %v329 = vunpack.c.l.b16 %v100
    %v330 = vunpack.c.h.b16 %v100
    %v331 = vunpack.c.l.b16 %v101
    %v332 = vunpack.c.l.b16 %v102
    %v333 = vunpack.c.h.b16 %v102
    %v334 = vunpack.c.l.b16 %v103
    %v335 = vunpack.c.h.b16 %v103
    %v336 = vunpack.c.l.b16 %v104
    %v337 = vunpack.c.l.b16 %v105
    %v338 = vunpack.c.h.b16 %v105
    %v339 = vunpack.c.l.b16 %v106
    %v340 = vunpack.c.h.b16 %v106
    %v341 = vunpack.c.l.b16 %v107
    %v342 = vunpack.c.l.b16 %v108
    %v343 = vunpack.c.h.b16 %v108
    %v344 = vunpack.c.l.b16 %v109
    %v345 = vunpack.c.h.b16 %v109
    %v346 = vunpack.c.l.b16 %v110
    %v347 = vunpack.c.l.b16 %v111
    %v348 = vunpack.c.h.b16 %v111
    %v349 = vunpack.c.l.b16 %v112
    %v350 = vunpack.c.h.b16 %v112
    %v351 = vunpack.c.l.b16 %v113
    %v352 = vunpack.c.l.b16 %v114
    %v353 = vunpack.c.h.b16 %v114
    %v354 = vunpack.c.l.b16 %v115
    %v355 = vunpack.c.h.b16 %v115
    %v356 = vunpack.c.l.b16 %v116
    %v357 = vunpack.c.l.b16 %v117
    %v358 = vunpack.c.h.b16 %v117
    %v359 = vunpack.c.l.b16 %v118
    %v360 = vunpack.c.h.b16 %v118
    %v361 = vunpack.c.l.b16 %v119
    %v362 = vunpack.c.l.b16 %v120
    %v363 = vunpack.c.h.b16 %v120
    %v364 = vunpack.c.l.b16 %v121
    %v365 = vunpack.c.h.b16 %v121
    %v366 = vunpack.c.l.b16 %v122
    %v367 = vunpack.c.l.b16 %v123
    %v368 = vunpack.c.h.b16 %v123
    %v369 = vunpack.c.l.b16 %v124
    %v370 = vunpack.c.h.b16 %v124
    %v371 = vunpack.c.l.b16 %v125
    %v372 = vunpack.c.l.b16 %v126
    %v373 = vunpack.c.h.b16 %v126
    %v374 = vunpack.c.l.b16 %v127
    %v375 = vunpack.c.h.b16 %v127
    %v376 = vunpack.c.l.b16 %v128
    %v377 = vunpack.c.l.b16 %v129
    %v378 = vunpack.c.h.b16 %v129
    %v379 = vunpack.c.l.b16 %v130
    %v380 = vunpack.c.h.b16 %v130
    %v381 = vunpack.c.l.b16 %v131
    %v382 = vunpack.c.l.b16 %v132
    %v383 = vunpack.c.h.b16 %v132
    %v384 = vunpack.c.l.b16 %v133
    %v385 = vunpack.c.h.b16 %v133
    %v386 = vunpack.c.l.b16 %v134
    %v387 = vunpack.c.l.b16 %v135
    %v388 = vunpack.c.h.b16 %v135
    %v389 = vunpack.c.l.b16 %v136
    %v390 = vunpack.c.h.b16 %v136
    %v391 = vunpack.c.l.b16 %v137
    %v392 = vunpack.c.l.b16 %v138
    %v393 = vunpack.c.h.b16 %v138
    %v394 = vunpack.c.l.b16 %v139
    %v395 = vunpack.c.h.b16 %v139
    %v396 = vunpack.c.l.b16 %v140
    %v397 = vpack.c.b16 %v242, %v237
    %v398 = vpack.c.b16 %v243, %v238
    %v399 = vpack.c.b16 %v244, %v239
    %v400 = vpack.c.b16 %v245, %v240
    %v401 = vpack.c.b16 %v246, %v241
    %v402 = vpack.c.b16 %v252, %v247
    %v403 = vpack.c.b16 %v253, %v248
    %v404 = vpack.c.b16 %v254, %v249
    %v405 = vpack.c.b16 %v255, %v250
    %v406 = vpack.c.b16 %v256, %v251
    %v407 = vpack.c.b16 %v262, %v257
    %v408 = vpack.c.b16 %v263, %v258
    %v409 = vpack.c.b16 %v264, %v259
    %v410 = vpack.c.b16 %v265, %v260
    %v411 = vpack.c.b16 %v266, %v261
    %v412 = vpack.c.b16 %v272, %v267
    %v413 = vpack.c.b16 %v273, %v268
    %v414 = vpack.c.b16 %v274, %v269
    %v415 = vpack.c.b16 %v275, %v270
    %v416 = vpack.c.b16 %v276, %v271
    %v417 = vpack.c.b16 %v282, %v277
    %v418 = vpack.c.b16 %v283, %v278
    %v419 = vpack.c.b16 %v284, %v279
    %v420 = vpack.c.b16 %v285, %v280
    %v421 = vpack.c.b16 %v286, %v281
    %v422 = vpack.c.b16 %v292, %v287
    %v423 = vpack.c.b16 %v293, %v288
    %v424 = vpack.c.b16 %v294, %v289
    %v425 = vpack.c.b16 %v295, %v290
    %v426 = vpack.c.b16 %v296, %v291
    %v427 = vpack.c.b16 %v302, %v297
    %v428 = vpack.c.b16 %v303, %v298
    %v429 = vpack.c.b16 %v304, %v299
    %v430 = vpack.c.b16 %v305, %v300
    %v431 = vpack.c.b16 %v306, %v301
    %v432 = vpack.c.b16 %v312, %v307
    %v433 = vpack.c.b16 %v313, %v308
    %v434 = vpack.c.b16 %v314, %v309
    %v435 = vpack.c.b16 %v315, %v310
    %v436 = vpack.c.b16 %v316, %v311
    %v437 = vpack.c.b16 %v322, %v317
    %v438 = vpack.c.b16 %v323, %v318
    %v439 = vpack.c.b16 %v324, %v319
    %v440 = vpack.c.b16 %v325, %v320
    %v441 = vpack.c.b16 %v326, %v321
    %v442 = vpack.c.b16 %v332, %v327
    %v443 = vpack.c.b16 %v333, %v328
    %v444 = vpack.c.b16 %v334, %v329
    %v445 = vpack.c.b16 %v335, %v330
    %v446 = vpack.c.b16 %v336, %v331
    %v447 = vpack.c.b16 %v342, %v337
    %v448 = vpack.c.b16 %v343, %v338
    %v449 = vpack.c.b16 %v344, %v339
    %v450 = vpack.c.b16 %v345, %v340
    %v451 = vpack.c.b16 %v346, %v341
    %v452 = vpack.c.b16 %v352, %v347
    %v453 = vpack.c.b16 %v353, %v348
    %v454 = vpack.c.b16 %v354, %v349
    %v455 = vpack.c.b16 %v355, %v350
    %v456 = vpack.c.b16 %v356, %v351
    %v457 = vpack.c.b16 %v362, %v357
    %v458 = vpack.c.b16 %v363, %v358
    %v459 = vpack.c.b16 %v364, %v359
    %v460 = vpack.c.b16 %v365, %v360
    %v461 = vpack.c.b16 %v366, %v361
    %v462 = vpack.c.b16 %v372, %v367
    %v463 = vpack.c.b16 %v373, %v368
    %v464 = vpack.c.b16 %v374, %v369
    %v465 = vpack.c.b16 %v375, %v370
    %v466 = vpack.c.b16 %v376, %v371
    %v467 = vpack.c.b16 %v382, %v377
    %v468 = vpack.c.b16 %v383, %v378
    %v469 = vpack.c.b16 %v384, %v379
    %v470 = vpack.c.b16 %v385, %v380
    %v471 = vpack.c.b16 %v386, %v381
    %v472 = vpack.c.b16 %v392, %v387
    %v473 = vpack.c.b16 %v393, %v388
    %v474 = vpack.c.b16 %v394, %v389
    %v475 = vpack.c.b16 %v395, %v390
    %v476 = vpack.c.b16 %v396, %v391
    %557 = vmatprep.subr.bf16.mxu0 %v433
    %558 = vmatpush1.bf16.msra.mxu0 %v432
    %559 = vmatprep.subr.bf16.mxu0 %v428
    %560 = vmatpush1.bf16.msra.mxu0 %v427
    %561 = vmatprep.subr.bf16.mxu0 %v423
    %562 = vmatpush1.bf16.msra.mxu0 %v422
    %563 = vmatprep.subr.bf16.mxu0 %v418
    %564 = vmatpush1.bf16.msra.mxu0 %v417
    %565 = vmatprep.subr.bf16.mxu0 %v413
    %566 = vmatpush1.bf16.msra.mxu0 %v412
    %567 = vmatprep.subr.bf16.mxu0 %v408
    %568 = vmatpush1.bf16.msra.mxu0 %v407
    %569 = vmatprep.subr.bf16.mxu0 %v403
    %570 = vmatpush1.bf16.msra.mxu0 %v402
    %571 = vmatprep.subr.bf16.mxu0 %v398
    %572 = vmatpush1.bf16.msra.mxu0 %v397
    %573 = vmatprep.subr.bf16.mxu0 %v473
    %574 = vmatpush2.bf16.msra.mxu0 %v472
    %575 = vmatprep.subr.bf16.mxu0 %v468
    %576 = vmatpush2.bf16.msra.mxu0 %v467
    %577 = vmatprep.subr.bf16.mxu0 %v463
    %578 = vmatpush2.bf16.msra.mxu0 %v462
    %579 = vmatprep.subr.bf16.mxu0 %v458
    %580 = vmatpush2.bf16.msra.mxu0 %v457
    %581 = vmatprep.subr.bf16.mxu0 %v453
    %582 = vmatpush2.bf16.msra.mxu0 %v452
    %583 = vmatprep.subr.bf16.mxu0 %v448
    %584 = vmatpush2.bf16.msra.mxu0 %v447
    %585 = vmatprep.subr.bf16.mxu0 %v443
    %586 = vmatpush2.bf16.msra.mxu0 %v442
    %587 = vmatprep.subr.bf16.mxu0 %v438
    %588 = vmatpush2.bf16.msra.mxu0 %v437
    %589 = vmatprep.mubr.bf16.mxu0 %v44
    %590 = vmatmul.mubr.bf16.gmra.mxu0 %v43
    %v591 = vpop.f32.mrf.mxu0
    %v592 = vadd.f32 0.0, %v591
    %v593 = vpop.f32.mrf.mxu0
    %v594 = vadd.f32 0.0, %v593
    %v595 = vpop.f32.mrf.mxu0
    %v596 = vpop.f32.mrf.mxu0
    %597 = vdwg.mxu0
    %598 = vmatprep.subr.bf16.mxu0 %v435
    %599 = vmatpush1.bf16.msra.mxu0 %v434
    %600 = vmatprep.subr.bf16.mxu0 %v430
    %601 = vmatpush1.bf16.msra.mxu0 %v429
    %602 = vmatprep.subr.bf16.mxu0 %v425
    %603 = vmatpush1.bf16.msra.mxu0 %v424
    %604 = vmatprep.subr.bf16.mxu0 %v420
    %605 = vmatpush1.bf16.msra.mxu0 %v419
    %606 = vmatprep.subr.bf16.mxu0 %v415
    %607 = vmatpush1.bf16.msra.mxu0 %v414
    %608 = vmatprep.subr.bf16.mxu0 %v410
    %609 = vmatpush1.bf16.msra.mxu0 %v409
    %610 = vmatprep.subr.bf16.mxu0 %v405
    %611 = vmatpush1.bf16.msra.mxu0 %v404
    %612 = vmatprep.subr.bf16.mxu0 %v400
    %613 = vmatpush1.bf16.msra.mxu0 %v399
    %614 = vmatprep.subr.bf16.mxu0 %v475
    %615 = vmatpush2.bf16.msra.mxu0 %v474
    %616 = vmatprep.subr.bf16.mxu0 %v470
    %617 = vmatpush2.bf16.msra.mxu0 %v469
    %618 = vmatprep.subr.bf16.mxu0 %v465
    %619 = vmatpush2.bf16.msra.mxu0 %v464
    %620 = vmatprep.subr.bf16.mxu0 %v460
    %621 = vmatpush2.bf16.msra.mxu0 %v459
    %622 = vmatprep.subr.bf16.mxu0 %v455
    %623 = vmatpush2.bf16.msra.mxu0 %v454
    %624 = vmatprep.subr.bf16.mxu0 %v450
    %625 = vmatpush2.bf16.msra.mxu0 %v449
    %626 = vmatprep.subr.bf16.mxu0 %v445
    %627 = vmatpush2.bf16.msra.mxu0 %v444
    %628 = vmatprep.subr.bf16.mxu0 %v440
    %629 = vmatpush2.bf16.msra.mxu0 %v439
    %630 = vmatprep.mubr.bf16.mxu0 %v44
    %631 = vmatmul.mubr.bf16.gmra.mxu0 %v43
    %v632 = vpop.f32.mrf.mxu0
    %v633 = vadd.f32 0.0, %v632
    %v634 = vpop.f32.mrf.mxu0
    %v635 = vadd.f32 0.0, %v634
    %v636 = vpop.f32.mrf.mxu0
    %v637 = vpop.f32.mrf.mxu0
    %638 = vdwg.mxu0
    %639 = vmatprep.subr.bf16.mxu0 0
    %640 = vmatpush1.bf16.msra.mxu0 %v436
    %641 = vmatprep.subr.bf16.mxu0 0
    %642 = vmatpush1.bf16.msra.mxu0 %v431
    %643 = vmatprep.subr.bf16.mxu0 0
    %644 = vmatpush1.bf16.msra.mxu0 %v426
    %645 = vmatprep.subr.bf16.mxu0 0
    %646 = vmatpush1.bf16.msra.mxu0 %v421
    %647 = vmatprep.subr.bf16.mxu0 0
    %648 = vmatpush1.bf16.msra.mxu0 %v416
    %649 = vmatprep.subr.bf16.mxu0 0
    %650 = vmatpush1.bf16.msra.mxu0 %v411
    %651 = vmatprep.subr.bf16.mxu0 0
    %652 = vmatpush1.bf16.msra.mxu0 %v406
    %653 = vmatprep.subr.bf16.mxu0 0
    %654 = vmatpush1.bf16.msra.mxu0 %v401
    %655 = vmatprep.subr.bf16.mxu0 0
    %656 = vmatpush2.bf16.msra.mxu0 %v476
    %657 = vmatprep.subr.bf16.mxu0 0
    %658 = vmatpush2.bf16.msra.mxu0 %v471
    %659 = vmatprep.subr.bf16.mxu0 0
    %660 = vmatpush2.bf16.msra.mxu0 %v466
    %661 = vmatprep.subr.bf16.mxu0 0
    %662 = vmatpush2.bf16.msra.mxu0 %v461
    %663 = vmatprep.subr.bf16.mxu0 0
    %664 = vmatpush2.bf16.msra.mxu0 %v456
    %665 = vmatprep.subr.bf16.mxu0 0
    %666 = vmatpush2.bf16.msra.mxu0 %v451
    %667 = vmatprep.subr.bf16.mxu0 0
    %668 = vmatpush2.bf16.msra.mxu0 %v446
    %669 = vmatprep.subr.bf16.mxu0 0
    %670 = vmatpush2.bf16.msra.mxu0 %v441
    %671 = vmatprep.mubr.bf16.mxu0 %v44
    %672 = vmatmul.mubr.bf16.gmra.mxu0 %v43
    %v673 = vpop.f32.mrf.mxu0
    %v674 = vadd.f32 0.0, %v673
    %v675 = vpop.f32.mrf.mxu0
    %v676 = vpop.f32.mrf.mxu0
    %v677 = vpop.f32.mrf.mxu0
    %678 = vdwg.mxu0
    %v680 = vrot.slane %v592, 4
    %681 = vrot.lane.b32.xlu0 %v680, 64
    %v682 = vpop.permute.xlu0 %681
    %v685 = vrot.slane %v594, 4
    %686 = vrot.lane.b32.xlu0 %v685, 64
    %v687 = vpop.permute.xlu0 %686
    %v690 = vrot.slane %v633, 4
    %691 = vrot.lane.b32.xlu0 %v690, 64
    %v692 = vpop.permute.xlu0 %691
    %v695 = vrot.slane %v635, 4
    %696 = vrot.lane.b32.xlu0 %v695, 64
    %v697 = vpop.permute.xlu0 %696
    %vm699 = vcmask 1043456
    %v700 = vsel %vm699, %v592, %v682
    %v701 = vsel %vm699, %v594, %v687
    %v702 = vsel %vm699, %v633, %v692
    %v703 = vsel %vm699, %v635, %v697
    %v704 = vpack.c.bf16 %v701, %v700
    %v705 = vpack.c.bf16 %v703, %v702
    %v706 = vpack.c.bf16 %v674, %v674
    %vm707 = vcmask 293888
    %v709 = vsel %vm707, %v42, 0
    %vm711 = vcmask 1041408
    %v713 = vsel %vm711, %v706, 0
    %715 = vmatprep.subr.bf16.mxu0 0
    %716 = vmatpush1.bf16.msra.mxu0 0
    %717 = vmatprep.subr.bf16.mxu0 0
    %718 = vmatpush1.bf16.msra.mxu0 0
    %719 = vmatprep.subr.bf16.mxu0 0
    %720 = vmatpush1.bf16.msra.mxu0 0
    %721 = vmatprep.subr.bf16.mxu0 0
    %722 = vmatpush1.bf16.msra.mxu0 0
    %723 = vmatprep.subr.bf16.mxu0 0
    %724 = vmatpush1.bf16.msra.mxu0 0
    %725 = vmatprep.subr.bf16.mxu0 0
    %726 = vmatpush1.bf16.msra.mxu0 %v713
    %727 = vmatprep.subr.bf16.mxu0 0
    %728 = vmatpush1.bf16.msra.mxu0 %v705
    %729 = vmatprep.subr.bf16.mxu0 0
    %730 = vmatpush1.bf16.msra.mxu0 %v704
    %731 = vmatprep.subr.bf16.mxu0 0
    %732 = vmatpush2.bf16.msra.mxu0 0
    %733 = vmatprep.subr.bf16.mxu0 0
    %734 = vmatpush2.bf16.msra.mxu0 0
    %735 = vmatprep.subr.bf16.mxu0 0
    %736 = vmatpush2.bf16.msra.mxu0 0
    %737 = vmatprep.subr.bf16.mxu0 0
    %738 = vmatpush2.bf16.msra.mxu0 0
    %739 = vmatprep.subr.bf16.mxu0 0
    %740 = vmatpush2.bf16.msra.mxu0 0
    %741 = vmatprep.subr.bf16.mxu0 0
    %742 = vmatpush2.bf16.msra.mxu0 0
    %743 = vmatprep.subr.bf16.mxu0 0
    %744 = vmatpush2.bf16.msra.mxu0 0
    %745 = vmatprep.subr.bf16.mxu0 0
    %746 = vmatpush2.bf16.msra.mxu0 0
    %747 = vmatprep.mubr.bf16.mxu0 0
    %748 = vmatmul.mubr.bf16.gmra.mxu0 %v709
    %v749 = vpop.f32.mrf.mxu0
    %v750 = vadd.f32 0.0, %v749
    %v751 = vpop.f32.mrf.mxu0
    %v752 = vpop.f32.mrf.mxu0
    %v753 = vpop.f32.mrf.mxu0
    %754 = vdwg.mxu0
    %756 = vrot.lane.b32.xlu0 %v592, 64
    %v757 = vpop.permute.xlu0 %756
    %760 = vrot.lane.b32.xlu0 %v594, 64
    %v761 = vpop.permute.xlu0 %760
    %764 = vrot.lane.b32.xlu0 %v633, 64
    %v765 = vpop.permute.xlu0 %764
    %768 = vrot.lane.b32.xlu0 %v635, 64
    %v769 = vpop.permute.xlu0 %768
    %v772 = vrot.slane %v674, 4
    %v774 = vsel %vm699, %v680, %v757
    %v775 = vsel %vm699, %v685, %v761
    %v776 = vsel %vm699, %v690, %v765
    %v777 = vsel %vm699, %v695, %v769
    %v778 = vpack.c.bf16 %v775, %v774
    %v779 = vpack.c.bf16 %v777, %v776
    %v780 = vpack.c.bf16 %v772, %v772
    %v782 = vsel %vm711, %v780, 0
    %784 = vmatprep.subr.bf16.mxu0 0
    %785 = vmatpush1.bf16.msra.mxu0 0
    %786 = vmatprep.subr.bf16.mxu0 0
    %787 = vmatpush1.bf16.msra.mxu0 0
    %788 = vmatprep.subr.bf16.mxu0 0
    %789 = vmatpush1.bf16.msra.mxu0 0
    %790 = vmatprep.subr.bf16.mxu0 0
    %791 = vmatpush1.bf16.msra.mxu0 0
    %792 = vmatprep.subr.bf16.mxu0 0
    %793 = vmatpush1.bf16.msra.mxu0 0
    %794 = vmatprep.subr.bf16.mxu0 0
    %795 = vmatpush1.bf16.msra.mxu0 %v782
    %796 = vmatprep.subr.bf16.mxu0 0
    %797 = vmatpush1.bf16.msra.mxu0 %v779
    %798 = vmatprep.subr.bf16.mxu0 0
    %799 = vmatpush1.bf16.msra.mxu0 %v778
    %800 = vmatprep.subr.bf16.mxu0 0
    %801 = vmatpush2.bf16.msra.mxu0 0
    %802 = vmatprep.subr.bf16.mxu0 0
    %803 = vmatpush2.bf16.msra.mxu0 0
    %804 = vmatprep.subr.bf16.mxu0 0
    %805 = vmatpush2.bf16.msra.mxu0 0
    %806 = vmatprep.subr.bf16.mxu0 0
    %807 = vmatpush2.bf16.msra.mxu0 0
    %808 = vmatprep.subr.bf16.mxu0 0
    %809 = vmatpush2.bf16.msra.mxu0 0
    %810 = vmatprep.subr.bf16.mxu0 0
    %811 = vmatpush2.bf16.msra.mxu0 0
    %812 = vmatprep.subr.bf16.mxu0 0
    %813 = vmatpush2.bf16.msra.mxu0 0
    %814 = vmatprep.subr.bf16.mxu0 0
    %815 = vmatpush2.bf16.msra.mxu0 0
    %816 = vmatprep.mubr.bf16.mxu0 0
    %817 = vmatmul.mubr.bf16.gmra.mxu0 %v709
    %v818 = vpop.f32.mrf.mxu0
    %v819 = vadd.f32 0.0, %v818
    %v820 = vpop.f32.mrf.mxu0
    %v821 = vpop.f32.mrf.mxu0
    %v822 = vpop.f32.mrf.mxu0
    %823 = vdwg.mxu0
    %vm824 = vcmask 523264
    %v825 = vsel %vm824, %v750, 0.0
    %826 = vadd.xlane.f32.xlu0 %v825
    %v827 = vpop.xlane.xlu0 %826
    %v828 = vsel %vm824, %v819, 0.0
    %829 = vadd.xlane.f32.xlu0 %v828
    %v830 = vpop.xlane.xlu0 %829
    %v831 = vrcp.pop 64.0
    %v832 = vmul.f32 %v827, %v831
    %v833 = vmul.f32 %v830, %v831
    %v834 = vsub.f32 %v750, %v832
    %v835 = vsub.f32 %v819, %v833
    %v836 = vmul.f32 %v834, %v834
    %v837 = vmul.f32 %v835, %v835
    %v838 = vsel %vm824, %v836, 0.0
    %839 = vadd.xlane.f32.xlu0 %v838
    %v840 = vpop.xlane.xlu0 %839
    %v841 = vsel %vm824, %v837, 0.0
    %842 = vadd.xlane.f32.xlu0 %v841
    %v843 = vpop.xlane.xlu0 %842
    %v844 = vmul.f32 %v840, %v831
    %v845 = vmul.f32 %v843, %v831
    %v846 = vadd.f32 %v844, 1e-05
    %v847 = vadd.f32 %v845, 1e-05
    %v848 = vrsqrt.pop %v846
    %v849 = vrsqrt.pop %v847
    %v850 = vmul.f32 %v834, %v848
    %v851 = vmul.f32 %v835, %v849
    %v852 = vmax.f32 %v850, 0.0
    %v853 = vmax.f32 %v851, 0.0
    %v854 = vld [vmem:[%s4] sm:$0x3]
    %v855 = vpack.c.bf16 %v853, %v852
    %v856 = vld [vmem:[%s3] sm:$0xff]
    %v857 = vld [vmem:[%s3 + $0x8] sm:$0xff]
    %v858 = vld [vmem:[%s3 + $0x10] sm:$0xff]
    %v859 = vld [vmem:[%s3 + $0x18] sm:$0xff]
    %v860 = vld [vmem:[%s3 + $0x20] sm:$0xff]
    %v861 = vld [vmem:[%s3 + $0x28] sm:$0xff]
    %v862 = vld [vmem:[%s3 + $0x30] sm:$0xff]
    %v863 = vld [vmem:[%s3 + $0x38] sm:$0xff]
    %v872 = vunpack.c.l.b16 %v856
    %v873 = vunpack.c.h.b16 %v856
    %v874 = vunpack.c.l.b16 %v857
    %v875 = vunpack.c.h.b16 %v857
    %v876 = vunpack.c.l.b16 %v858
    %v877 = vunpack.c.h.b16 %v858
    %v878 = vunpack.c.l.b16 %v859
    %v879 = vunpack.c.h.b16 %v859
    %v880 = vunpack.c.l.b16 %v860
    %v881 = vunpack.c.h.b16 %v860
    %v882 = vunpack.c.l.b16 %v861
    %v883 = vunpack.c.h.b16 %v861
    %v884 = vunpack.c.l.b16 %v862
    %v885 = vunpack.c.h.b16 %v862
    %v886 = vunpack.c.l.b16 %v863
    %v887 = vunpack.c.h.b16 %v863
    %v888 = vpack.c.b16 %v874, %v872
    %v889 = vpack.c.b16 %v875, %v873
    %v890 = vpack.c.b16 %v878, %v876
    %v891 = vpack.c.b16 %v879, %v877
    %v892 = vpack.c.b16 %v882, %v880
    %v893 = vpack.c.b16 %v883, %v881
    %v894 = vpack.c.b16 %v886, %v884
    %v895 = vpack.c.b16 %v887, %v885
    %v905 = vsel %vm824, %v855, 0
    %907 = vmatprep.subr.bf16.mxu0 0
    %908 = vmatpush1.bf16.msra.mxu0 0
    %909 = vmatprep.subr.bf16.mxu0 0
    %910 = vmatpush1.bf16.msra.mxu0 0
    %911 = vmatprep.subr.bf16.mxu0 0
    %912 = vmatpush1.bf16.msra.mxu0 0
    %913 = vmatprep.subr.bf16.mxu0 0
    %914 = vmatpush1.bf16.msra.mxu0 0
    %915 = vmatprep.subr.bf16.mxu0 %v895
    %916 = vmatpush1.bf16.msra.mxu0 %v894
    %917 = vmatprep.subr.bf16.mxu0 %v893
    %918 = vmatpush1.bf16.msra.mxu0 %v892
    %919 = vmatprep.subr.bf16.mxu0 %v891
    %920 = vmatpush1.bf16.msra.mxu0 %v890
    %921 = vmatprep.subr.bf16.mxu0 %v889
    %922 = vmatpush1.bf16.msra.mxu0 %v888
    %923 = vmatprep.subr.bf16.mxu0 0
    %924 = vmatpush2.bf16.msra.mxu0 0
    %925 = vmatprep.subr.bf16.mxu0 0
    %926 = vmatpush2.bf16.msra.mxu0 0
    %927 = vmatprep.subr.bf16.mxu0 0
    %928 = vmatpush2.bf16.msra.mxu0 0
    %929 = vmatprep.subr.bf16.mxu0 0
    %930 = vmatpush2.bf16.msra.mxu0 0
    %931 = vmatprep.subr.bf16.mxu0 0
    %932 = vmatpush2.bf16.msra.mxu0 0
    %933 = vmatprep.subr.bf16.mxu0 0
    %934 = vmatpush2.bf16.msra.mxu0 0
    %935 = vmatprep.subr.bf16.mxu0 0
    %936 = vmatpush2.bf16.msra.mxu0 0
    %937 = vmatprep.subr.bf16.mxu0 0
    %938 = vmatpush2.bf16.msra.mxu0 0
    %939 = vmatprep.mubr.bf16.mxu0 0
    %940 = vmatmul.mubr.bf16.gmra.mxu0 %v905
    %v941 = vpop.f32.mrf.mxu0
    %v942 = vadd.f32 0.0, %v941
    %v943 = vpop.f32.mrf.mxu0
    %v944 = vadd.f32 0.0, %v943
    %v945 = vpop.f32.mrf.mxu0
    %v946 = vadd.f32 0.0, %v945
    %v947 = vpop.f32.mrf.mxu0
    %v948 = vadd.f32 0.0, %v947
    %949 = vdwg.mxu0
    %951 = vrot.lane.b32.xlu0 %v942, 112
    %v952 = vpop.permute.xlu0 %951
    %954 = vrot.lane.b32.xlu0 %v942, 96
    %v955 = vpop.permute.xlu0 %954
    %957 = vrot.lane.b32.xlu0 %v942, 80
    %v958 = vpop.permute.xlu0 %957
    %960 = vrot.lane.b32.xlu0 %v942, 64
    %v961 = vpop.permute.xlu0 %960
    %963 = vrot.lane.b32.xlu0 %v942, 48
    %v964 = vpop.permute.xlu0 %963
    %966 = vrot.lane.b32.xlu0 %v942, 32
    %v967 = vpop.permute.xlu0 %966
    %969 = vrot.lane.b32.xlu0 %v942, 16
    %v970 = vpop.permute.xlu0 %969
    %v972 = vpack.c.bf16 %v952, %v942
    %v973 = vpack.c.bf16 %v958, %v955
    %v974 = vpack.c.bf16 %v964, %v961
    %v975 = vpack.c.bf16 %v970, %v967
    %v976 = vpack.c.bf16 %v944, %v944
    %vm977 = vcmask 588800
    %v979 = vsel %vm977, %v854, 0
    %v982 = vsel %vm699, %v976, 0
    %984 = vmatprep.subr.bf16.mxu0 0
    %985 = vmatpush1.bf16.msra.mxu0 0
    %986 = vmatprep.subr.bf16.mxu0 0
    %987 = vmatpush1.bf16.msra.mxu0 0
    %988 = vmatprep.subr.bf16.mxu0 0
    %989 = vmatpush1.bf16.msra.mxu0 0
    %990 = vmatprep.subr.bf16.mxu0 0
    %991 = vmatpush1.bf16.msra.mxu0 %v982
    %992 = vmatprep.subr.bf16.mxu0 0
    %993 = vmatpush1.bf16.msra.mxu0 %v975
    %994 = vmatprep.subr.bf16.mxu0 0
    %995 = vmatpush1.bf16.msra.mxu0 %v974
    %996 = vmatprep.subr.bf16.mxu0 0
    %997 = vmatpush1.bf16.msra.mxu0 %v973
    %998 = vmatprep.subr.bf16.mxu0 0
    %999 = vmatpush1.bf16.msra.mxu0 %v972
    %1000 = vmatprep.subr.bf16.mxu0 0
    %1001 = vmatpush2.bf16.msra.mxu0 0
    %1002 = vmatprep.subr.bf16.mxu0 0
    %1003 = vmatpush2.bf16.msra.mxu0 0
    %1004 = vmatprep.subr.bf16.mxu0 0
    %1005 = vmatpush2.bf16.msra.mxu0 0
    %1006 = vmatprep.subr.bf16.mxu0 0
    %1007 = vmatpush2.bf16.msra.mxu0 0
    %1008 = vmatprep.subr.bf16.mxu0 0
    %1009 = vmatpush2.bf16.msra.mxu0 0
    %1010 = vmatprep.subr.bf16.mxu0 0
    %1011 = vmatpush2.bf16.msra.mxu0 0
    %1012 = vmatprep.subr.bf16.mxu0 0
    %1013 = vmatpush2.bf16.msra.mxu0 0
    %1014 = vmatprep.subr.bf16.mxu0 0
    %1015 = vmatpush2.bf16.msra.mxu0 0
    %1016 = vmatprep.mubr.bf16.mxu0 0
    %1017 = vmatmul.mubr.bf16.gmra.mxu0 %v979
    %v1018 = vpop.f32.mrf.mxu0
    %v1019 = vadd.f32 0.0, %v1018
    %v1020 = vpop.f32.mrf.mxu0
    %v1021 = vpop.f32.mrf.mxu0
    %v1022 = vpop.f32.mrf.mxu0
    %1023 = vdwg.mxu0
    %1025 = vrot.lane.b32.xlu0 %v946, 112
    %v1026 = vpop.permute.xlu0 %1025
    %1028 = vrot.lane.b32.xlu0 %v946, 96
    %v1029 = vpop.permute.xlu0 %1028
    %1031 = vrot.lane.b32.xlu0 %v946, 80
    %v1032 = vpop.permute.xlu0 %1031
    %1034 = vrot.lane.b32.xlu0 %v946, 64
    %v1035 = vpop.permute.xlu0 %1034
    %1037 = vrot.lane.b32.xlu0 %v946, 48
    %v1038 = vpop.permute.xlu0 %1037
    %1040 = vrot.lane.b32.xlu0 %v946, 32
    %v1041 = vpop.permute.xlu0 %1040
    %1043 = vrot.lane.b32.xlu0 %v946, 16
    %v1044 = vpop.permute.xlu0 %1043
    %v1046 = vpack.c.bf16 %v1026, %v946
    %v1047 = vpack.c.bf16 %v1032, %v1029
    %v1048 = vpack.c.bf16 %v1038, %v1035
    %v1049 = vpack.c.bf16 %v1044, %v1041
    %v1050 = vpack.c.bf16 %v948, %v948
    %v1052 = vsel %vm699, %v1050, 0
    %1054 = vmatprep.subr.bf16.mxu0 0
    %1055 = vmatpush1.bf16.msra.mxu0 0
    %1056 = vmatprep.subr.bf16.mxu0 0
    %1057 = vmatpush1.bf16.msra.mxu0 0
    %1058 = vmatprep.subr.bf16.mxu0 0
    %1059 = vmatpush1.bf16.msra.mxu0 0
    %1060 = vmatprep.subr.bf16.mxu0 0
    %1061 = vmatpush1.bf16.msra.mxu0 %v1052
    %1062 = vmatprep.subr.bf16.mxu0 0
    %1063 = vmatpush1.bf16.msra.mxu0 %v1049
    %1064 = vmatprep.subr.bf16.mxu0 0
    %1065 = vmatpush1.bf16.msra.mxu0 %v1048
    %1066 = vmatprep.subr.bf16.mxu0 0
    %1067 = vmatpush1.bf16.msra.mxu0 %v1047
    %1068 = vmatprep.subr.bf16.mxu0 0
    %1069 = vmatpush1.bf16.msra.mxu0 %v1046
    %1070 = vmatprep.subr.bf16.mxu0 0
    %1071 = vmatpush2.bf16.msra.mxu0 0
    %1072 = vmatprep.subr.bf16.mxu0 0
    %1073 = vmatpush2.bf16.msra.mxu0 0
    %1074 = vmatprep.subr.bf16.mxu0 0
    %1075 = vmatpush2.bf16.msra.mxu0 0
    %1076 = vmatprep.subr.bf16.mxu0 0
    %1077 = vmatpush2.bf16.msra.mxu0 0
    %1078 = vmatprep.subr.bf16.mxu0 0
    %1079 = vmatpush2.bf16.msra.mxu0 0
    %1080 = vmatprep.subr.bf16.mxu0 0
    %1081 = vmatpush2.bf16.msra.mxu0 0
    %1082 = vmatprep.subr.bf16.mxu0 0
    %1083 = vmatpush2.bf16.msra.mxu0 0
    %1084 = vmatprep.subr.bf16.mxu0 0
    %1085 = vmatpush2.bf16.msra.mxu0 0
    %1086 = vmatprep.mubr.bf16.mxu0 0
    %1087 = vmatmul.mubr.bf16.gmra.mxu0 %v979
    %v1088 = vpop.f32.mrf.mxu0
    %v1089 = vadd.f32 0.0, %v1088
    %v1090 = vpop.f32.mrf.mxu0
    %v1091 = vpop.f32.mrf.mxu0
    %v1092 = vpop.f32.mrf.mxu0
    %1093 = vdwg.mxu0
    %v1095 = vrot.slane %v1089, 4
    %v1097 = vsel %vm699, %v1019, %v1095
    %vm1098 = vcmask 130048
    %v1099 = vsel %vm1098, %v1097, 0.0
    %1100 = vadd.xlane.f32.xlu0 %v1099
    %v1101 = vpop.xlane.xlu0 %1100
    %v1102 = vrcp.pop 16.0
    %v1103 = vmul.f32 %v1101, %v1102
    %v1104 = vsub.f32 %v1097, %v1103
    %v1105 = vmul.f32 %v1104, %v1104
    %v1106 = vsel %vm1098, %v1105, 0.0
    %1107 = vadd.xlane.f32.xlu0 %v1106
    %v1108 = vpop.xlane.xlu0 %1107
    %v1109 = vmul.f32 %v1108, %v1102
    %v1110 = vadd.f32 %v1109, 1e-05
    %v1111 = vrsqrt.pop %v1110
    %v1112 = vmul.f32 %v1104, %v1111
    %v1113 = vmax.f32 %v1112, 0.0
    %v1115 = vrot.slane %v1113, 1
    %1116 = vrot.lane.b32.xlu0 %v1115, 16
    %v1117 = vpop.permute.xlu0 %1116
    %v1119 = vrot.slane %v1113, 2
    %1120 = vrot.lane.b32.xlu0 %v1119, 32
    %v1121 = vpop.permute.xlu0 %1120
    %v1123 = vrot.slane %v1113, 3
    %1124 = vrot.lane.b32.xlu0 %v1123, 48
    %v1125 = vpop.permute.xlu0 %1124
    %v1127 = vsel %vm1098, %v1113, %v1117
    %vm1128 = vcmask 261120
    %v1129 = vsel %vm1128, %v1127, %v1121
    %vm1130 = vcmask 392192
    %v1131 = vsel %vm1130, %v1129, %v1125
    %v1133 = vrot.slane %v1131, 3
    %vm1135 = vcmask 1040384
    %v1136 = vsel %vm1135, %v1131, %v1133
    %v1137 = vpack.c.bf16 %v1136, %v1136
    %v1138 = vld [vmem:[%s5] sm:$0xff]
    %v1139 = vld [vmem:[%s5 + $0x8] sm:$0xff]
    %v1140 = vld [vmem:[%s5 + $0x10] sm:$0xff]
    %v1141 = vld [vmem:[%s5 + $0x18] sm:$0xff]
    %v1142 = vld [vmem:[%s5 + $0x20] sm:$0xff]
    %v1143 = vld [vmem:[%s5 + $0x28] sm:$0xff]
    %v1144 = vld [vmem:[%s5 + $0x30] sm:$0xff]
    %v1145 = vld [vmem:[%s5 + $0x38] sm:$0xff]
    %v1146 = vld [vmem:[%s5 + $0x40] sm:$0xff]
    %v1147 = vld [vmem:[%s5 + $0x48] sm:$0xff]
    %v1148 = vld [vmem:[%s5 + $0x50] sm:$0xff]
    %v1149 = vld [vmem:[%s5 + $0x58] sm:$0xff]
    %v1150 = vld [vmem:[%s5 + $0x60] sm:$0xff]
    %v1151 = vld [vmem:[%s5 + $0x68] sm:$0xff]
    %v1152 = vld [vmem:[%s5 + $0x70] sm:$0xff]
    %v1153 = vld [vmem:[%s5 + $0x78] sm:$0xff]
    %v1154 = vld [vmem:[%s6] sm:$0xf]
    %v1156 = vlaneseq
    %v1157 = vshrl.u32 %v1156, 7
    %v1158 = vsub.s32 0, %v1157
    %v1159 = vrot.slane %v1154, %v1158
    %v1160 = vlaneseq
    %v1161 = vshrl.u32 %v1160, 7
    %v1162 = vsub.s32 1, %v1161
    %v1163 = vrot.slane %v1154, %v1162
    %v1164 = vlaneseq
    %v1165 = vshrl.u32 %v1164, 7
    %v1166 = vsub.s32 2, %v1165
    %v1167 = vrot.slane %v1154, %v1166
    %v1168 = vlaneseq
    %v1169 = vshrl.u32 %v1168, 7
    %v1170 = vsub.s32 3, %v1169
    %v1171 = vrot.slane %v1154, %v1170
    %v1192 = vunpack.c.l.b16 %v1138
    %v1193 = vunpack.c.h.b16 %v1138
    %v1194 = vunpack.c.l.b16 %v1139
    %v1195 = vunpack.c.h.b16 %v1139
    %v1196 = vunpack.c.l.b16 %v1140
    %v1197 = vunpack.c.h.b16 %v1140
    %v1198 = vunpack.c.l.b16 %v1141
    %v1199 = vunpack.c.h.b16 %v1141
    %v1200 = vunpack.c.l.b16 %v1142
    %v1201 = vunpack.c.h.b16 %v1142
    %v1202 = vunpack.c.l.b16 %v1143
    %v1203 = vunpack.c.h.b16 %v1143
    %v1204 = vunpack.c.l.b16 %v1144
    %v1205 = vunpack.c.h.b16 %v1144
    %v1206 = vunpack.c.l.b16 %v1145
    %v1207 = vunpack.c.h.b16 %v1145
    %v1208 = vunpack.c.l.b16 %v1146
    %v1209 = vunpack.c.h.b16 %v1146
    %v1210 = vunpack.c.l.b16 %v1147
    %v1211 = vunpack.c.h.b16 %v1147
    %v1212 = vunpack.c.l.b16 %v1148
    %v1213 = vunpack.c.h.b16 %v1148
    %v1214 = vunpack.c.l.b16 %v1149
    %v1215 = vunpack.c.h.b16 %v1149
    %v1216 = vunpack.c.l.b16 %v1150
    %v1217 = vunpack.c.h.b16 %v1150
    %v1218 = vunpack.c.l.b16 %v1151
    %v1219 = vunpack.c.h.b16 %v1151
    %v1220 = vunpack.c.l.b16 %v1152
    %v1221 = vunpack.c.h.b16 %v1152
    %v1222 = vunpack.c.l.b16 %v1153
    %v1223 = vunpack.c.h.b16 %v1153
    %v1224 = vpack.c.b16 %v1196, %v1192
    %v1225 = vpack.c.b16 %v1197, %v1193
    %v1226 = vpack.c.b16 %v1198, %v1194
    %v1227 = vpack.c.b16 %v1199, %v1195
    %v1228 = vpack.c.b16 %v1204, %v1200
    %v1229 = vpack.c.b16 %v1205, %v1201
    %v1230 = vpack.c.b16 %v1206, %v1202
    %v1231 = vpack.c.b16 %v1207, %v1203
    %v1232 = vpack.c.b16 %v1212, %v1208
    %v1233 = vpack.c.b16 %v1213, %v1209
    %v1234 = vpack.c.b16 %v1214, %v1210
    %v1235 = vpack.c.b16 %v1215, %v1211
    %v1236 = vpack.c.b16 %v1220, %v1216
    %v1237 = vpack.c.b16 %v1221, %v1217
    %v1238 = vpack.c.b16 %v1222, %v1218
    %v1239 = vpack.c.b16 %v1223, %v1219
    %v1257 = vsel %vm824, %v1137, 0
    %1259 = vmatprep.subr.bf16.mxu0 0
    %1260 = vmatpush1.bf16.msra.mxu0 0
    %1261 = vmatprep.subr.bf16.mxu0 0
    %1262 = vmatpush1.bf16.msra.mxu0 0
    %1263 = vmatprep.subr.bf16.mxu0 0
    %1264 = vmatpush1.bf16.msra.mxu0 0
    %1265 = vmatprep.subr.bf16.mxu0 0
    %1266 = vmatpush1.bf16.msra.mxu0 0
    %1267 = vmatprep.subr.bf16.mxu0 %v1237
    %1268 = vmatpush1.bf16.msra.mxu0 %v1236
    %1269 = vmatprep.subr.bf16.mxu0 %v1233
    %1270 = vmatpush1.bf16.msra.mxu0 %v1232
    %1271 = vmatprep.subr.bf16.mxu0 %v1229
    %1272 = vmatpush1.bf16.msra.mxu0 %v1228
    %1273 = vmatprep.subr.bf16.mxu0 %v1225
    %1274 = vmatpush1.bf16.msra.mxu0 %v1224
    %1275 = vmatprep.subr.bf16.mxu0 0
    %1276 = vmatpush2.bf16.msra.mxu0 0
    %1277 = vmatprep.subr.bf16.mxu0 0
    %1278 = vmatpush2.bf16.msra.mxu0 0
    %1279 = vmatprep.subr.bf16.mxu0 0
    %1280 = vmatpush2.bf16.msra.mxu0 0
    %1281 = vmatprep.subr.bf16.mxu0 0
    %1282 = vmatpush2.bf16.msra.mxu0 0
    %1283 = vmatprep.subr.bf16.mxu0 0
    %1284 = vmatpush2.bf16.msra.mxu0 0
    %1285 = vmatprep.subr.bf16.mxu0 0
    %1286 = vmatpush2.bf16.msra.mxu0 0
    %1287 = vmatprep.subr.bf16.mxu0 0
    %1288 = vmatpush2.bf16.msra.mxu0 0
    %1289 = vmatprep.subr.bf16.mxu0 0
    %1290 = vmatpush2.bf16.msra.mxu0 0
    %1291 = vmatprep.mubr.bf16.mxu0 0
    %1292 = vmatmul.mubr.bf16.gmra.mxu0 %v1257
    %v1293 = vpop.f32.mrf.mxu0
    %v1294 = vadd.f32 %v1159, %v1293
    %v1295 = vpop.f32.mrf.mxu0
    %v1296 = vadd.f32 %v1163, %v1295
    %v1297 = vpop.f32.mrf.mxu0
    %v1298 = vpop.f32.mrf.mxu0
    %1299 = vdwg.mxu0
    %1300 = vmatprep.subr.bf16.mxu0 0
    %1301 = vmatpush1.bf16.msra.mxu0 0
    %1302 = vmatprep.subr.bf16.mxu0 0
    %1303 = vmatpush1.bf16.msra.mxu0 0
    %1304 = vmatprep.subr.bf16.mxu0 0
    %1305 = vmatpush1.bf16.msra.mxu0 0
    %1306 = vmatprep.subr.bf16.mxu0 0
    %1307 = vmatpush1.bf16.msra.mxu0 0
    %1308 = vmatprep.subr.bf16.mxu0 %v1239
    %1309 = vmatpush1.bf16.msra.mxu0 %v1238
    %1310 = vmatprep.subr.bf16.mxu0 %v1235
    %1311 = vmatpush1.bf16.msra.mxu0 %v1234
    %1312 = vmatprep.subr.bf16.mxu0 %v1231
    %1313 = vmatpush1.bf16.msra.mxu0 %v1230
    %1314 = vmatprep.subr.bf16.mxu0 %v1227
    %1315 = vmatpush1.bf16.msra.mxu0 %v1226
    %1316 = vmatprep.subr.bf16.mxu0 0
    %1317 = vmatpush2.bf16.msra.mxu0 0
    %1318 = vmatprep.subr.bf16.mxu0 0
    %1319 = vmatpush2.bf16.msra.mxu0 0
    %1320 = vmatprep.subr.bf16.mxu0 0
    %1321 = vmatpush2.bf16.msra.mxu0 0
    %1322 = vmatprep.subr.bf16.mxu0 0
    %1323 = vmatpush2.bf16.msra.mxu0 0
    %1324 = vmatprep.subr.bf16.mxu0 0
    %1325 = vmatpush2.bf16.msra.mxu0 0
    %1326 = vmatprep.subr.bf16.mxu0 0
    %1327 = vmatpush2.bf16.msra.mxu0 0
    %1328 = vmatprep.subr.bf16.mxu0 0
    %1329 = vmatpush2.bf16.msra.mxu0 0
    %1330 = vmatprep.subr.bf16.mxu0 0
    %1331 = vmatpush2.bf16.msra.mxu0 0
    %1332 = vmatprep.mubr.bf16.mxu0 0
    %1333 = vmatmul.mubr.bf16.gmra.mxu0 %v1257
    %v1334 = vpop.f32.mrf.mxu0
    %v1335 = vadd.f32 %v1167, %v1334
    %v1336 = vpop.f32.mrf.mxu0
    %v1337 = vadd.f32 %v1171, %v1336
    %v1338 = vpop.f32.mrf.mxu0
    %v1339 = vpop.f32.mrf.mxu0
    %1340 = vdwg.mxu0
    %v1341 = vtanh.pop %v1294
    %v1342 = vtanh.pop %v1296
    %v1343 = vtanh.pop %v1335
    %v1344 = vtanh.pop %v1337
    %v1345 = vpack.c.bf16 %v1341, %v1341
    %v1346 = vpack.c.bf16 %v1342, %v1342
    %v1347 = vpack.c.bf16 %v1343, %v1343
    %v1348 = vpack.c.bf16 %v1344, %v1344
    %v1349 = vld [vmem:[%s7] sm:$0xf]
    %v1350 = vld [vmem:[%s7 + $0x4] sm:$0xf]
    %v1351 = vld [vmem:[%s7 + $0x8] sm:$0xf]
    %v1352 = vld [vmem:[%s7 + $0xc] sm:$0xf]
    %v1353 = vld [vmem:[%s7 + $0x10] sm:$0xf]
    %v1354 = vld [vmem:[%s7 + $0x14] sm:$0xf]
    %v1355 = vld [vmem:[%s7 + $0x18] sm:$0xf]
    %v1356 = vld [vmem:[%s7 + $0x1c] sm:$0xf]
    %v1357 = vld [vmem:[%s7 + $0x20] sm:$0xf]
    %v1358 = vld [vmem:[%s7 + $0x24] sm:$0xf]
    %v1359 = vld [vmem:[%s7 + $0x28] sm:$0xf]
    %v1360 = vld [vmem:[%s7 + $0x2c] sm:$0xf]
    %v1361 = vld [vmem:[%s7 + $0x30] sm:$0xf]
    %v1362 = vld [vmem:[%s7 + $0x34] sm:$0xf]
    %v1363 = vld [vmem:[%s7 + $0x38] sm:$0xf]
    %v1364 = vld [vmem:[%s7 + $0x3c] sm:$0xf]
    %v1365 = vld [vmem:[%s7 + $0x40] sm:$0xf]
    %v1366 = vld [vmem:[%s7 + $0x44] sm:$0xf]
    %v1367 = vld [vmem:[%s7 + $0x48] sm:$0xf]
    %v1368 = vld [vmem:[%s7 + $0x4c] sm:$0xf]
    %v1369 = vld [vmem:[%s7 + $0x50] sm:$0xf]
    %v1370 = vld [vmem:[%s7 + $0x54] sm:$0xf]
    %v1371 = vld [vmem:[%s7 + $0x58] sm:$0xf]
    %v1372 = vld [vmem:[%s7 + $0x5c] sm:$0xf]
    %v1373 = vld [vmem:[%s7 + $0x60] sm:$0xf]
    %v1374 = vld [vmem:[%s7 + $0x64] sm:$0xf]
    %v1375 = vld [vmem:[%s7 + $0x68] sm:$0xf]
    %v1376 = vld [vmem:[%s7 + $0x6c] sm:$0xf]
    %v1377 = vld [vmem:[%s7 + $0x70] sm:$0xf]
    %v1378 = vld [vmem:[%s7 + $0x74] sm:$0xf]
    %v1379 = vld [vmem:[%s7 + $0x78] sm:$0xf]
    %v1380 = vld [vmem:[%s7 + $0x7c] sm:$0xf]
    %v1381 = vld [vmem:[%s7 + $0x80] sm:$0xf]
    %v1382 = vld [vmem:[%s7 + $0x84] sm:$0xf]
    %v1383 = vld [vmem:[%s7 + $0x88] sm:$0xf]
    %v1384 = vld [vmem:[%s7 + $0x8c] sm:$0xf]
    %v1385 = vld [vmem:[%s7 + $0x90] sm:$0xf]
    %v1386 = vld [vmem:[%s7 + $0x94] sm:$0xf]
    %v1387 = vld [vmem:[%s7 + $0x98] sm:$0xf]
    %v1388 = vld [vmem:[%s7 + $0x9c] sm:$0xf]
    %v1389 = vld [vmem:[%s7 + $0xa0] sm:$0xf]
    %v1390 = vld [vmem:[%s7 + $0xa4] sm:$0xf]
    %v1391 = vld [vmem:[%s7 + $0xa8] sm:$0xf]
    %v1392 = vld [vmem:[%s7 + $0xac] sm:$0xf]
    %v1393 = vld [vmem:[%s7 + $0xb0] sm:$0xf]
    %v1394 = vld [vmem:[%s7 + $0xb4] sm:$0xf]
    %v1395 = vld [vmem:[%s7 + $0xb8] sm:$0xf]
    %v1396 = vld [vmem:[%s7 + $0xbc] sm:$0xf]
    %v1397 = vld [vmem:[%s7 + $0xc0] sm:$0xf]
    %v1398 = vld [vmem:[%s7 + $0xc4] sm:$0xf]
    %v1399 = vld [vmem:[%s7 + $0xc8] sm:$0xf]
    %v1400 = vld [vmem:[%s7 + $0xcc] sm:$0xf]
    %v1401 = vld [vmem:[%s7 + $0xd0] sm:$0xf]
    %v1402 = vld [vmem:[%s7 + $0xd4] sm:$0xf]
    %v1403 = vld [vmem:[%s7 + $0xd8] sm:$0xf]
    %v1404 = vld [vmem:[%s7 + $0xdc] sm:$0xf]
    %v1405 = vld [vmem:[%s7 + $0xe0] sm:$0xf]
    %v1406 = vld [vmem:[%s7 + $0xe4] sm:$0xf]
    %v1407 = vld [vmem:[%s7 + $0xe8] sm:$0xf]
    %v1408 = vld [vmem:[%s7 + $0xec] sm:$0xf]
    %v1409 = vld [vmem:[%s7 + $0xf0] sm:$0xf]
    %v1410 = vld [vmem:[%s7 + $0xf4] sm:$0xf]
    %v1411 = vld [vmem:[%s7 + $0xf8] sm:$0xf]
    %v1412 = vld [vmem:[%s7 + $0xfc] sm:$0xf]
    %v1413 = vld [vmem:[%s8] sm:$0x1]
    %v1415 = vlaneseq
    %v1416 = vshrl.u32 %v1415, 7
    %v1417 = vsub.s32 0, %v1416
    %v1418 = vrot.slane %v1413, %v1417
    %v1484 = vunpack.c.l.b16 %v1349
    %v1485 = vunpack.c.l.b16 %v1350
    %v1486 = vunpack.c.l.b16 %v1351
    %v1487 = vunpack.c.l.b16 %v1352
    %v1488 = vunpack.c.l.b16 %v1353
    %v1489 = vunpack.c.l.b16 %v1354
    %v1490 = vunpack.c.l.b16 %v1355
    %v1491 = vunpack.c.l.b16 %v1356
    %v1492 = vunpack.c.l.b16 %v1357
    %v1493 = vunpack.c.l.b16 %v1358
    %v1494 = vunpack.c.l.b16 %v1359
    %v1495 = vunpack.c.l.b16 %v1360
    %v1496 = vunpack.c.l.b16 %v1361
    %v1497 = vunpack.c.l.b16 %v1362
    %v1498 = vunpack.c.l.b16 %v1363
    %v1499 = vunpack.c.l.b16 %v1364
    %v1500 = vunpack.c.l.b16 %v1365
    %v1501 = vunpack.c.l.b16 %v1366
    %v1502 = vunpack.c.l.b16 %v1367
    %v1503 = vunpack.c.l.b16 %v1368
    %v1504 = vunpack.c.l.b16 %v1369
    %v1505 = vunpack.c.l.b16 %v1370
    %v1506 = vunpack.c.l.b16 %v1371
    %v1507 = vunpack.c.l.b16 %v1372
    %v1508 = vunpack.c.l.b16 %v1373
    %v1509 = vunpack.c.l.b16 %v1374
    %v1510 = vunpack.c.l.b16 %v1375
    %v1511 = vunpack.c.l.b16 %v1376
    %v1512 = vunpack.c.l.b16 %v1377
    %v1513 = vunpack.c.l.b16 %v1378
    %v1514 = vunpack.c.l.b16 %v1379
    %v1515 = vunpack.c.l.b16 %v1380
    %v1516 = vunpack.c.l.b16 %v1381
    %v1517 = vunpack.c.l.b16 %v1382
    %v1518 = vunpack.c.l.b16 %v1383
    %v1519 = vunpack.c.l.b16 %v1384
    %v1520 = vunpack.c.l.b16 %v1385
    %v1521 = vunpack.c.l.b16 %v1386
    %v1522 = vunpack.c.l.b16 %v1387
    %v1523 = vunpack.c.l.b16 %v1388
    %v1524 = vunpack.c.l.b16 %v1389
    %v1525 = vunpack.c.l.b16 %v1390
    %v1526 = vunpack.c.l.b16 %v1391
    %v1527 = vunpack.c.l.b16 %v1392
    %v1528 = vunpack.c.l.b16 %v1393
    %v1529 = vunpack.c.l.b16 %v1394
    %v1530 = vunpack.c.l.b16 %v1395
    %v1531 = vunpack.c.l.b16 %v1396
    %v1532 = vunpack.c.l.b16 %v1397
    %v1533 = vunpack.c.l.b16 %v1398
    %v1534 = vunpack.c.l.b16 %v1399
    %v1535 = vunpack.c.l.b16 %v1400
    %v1536 = vunpack.c.l.b16 %v1401
    %v1537 = vunpack.c.l.b16 %v1402
    %v1538 = vunpack.c.l.b16 %v1403
    %v1539 = vunpack.c.l.b16 %v1404
    %v1540 = vunpack.c.l.b16 %v1405
    %v1541 = vunpack.c.l.b16 %v1406
    %v1542 = vunpack.c.l.b16 %v1407
    %v1543 = vunpack.c.l.b16 %v1408
    %v1544 = vunpack.c.l.b16 %v1409
    %v1545 = vunpack.c.l.b16 %v1410
    %v1546 = vunpack.c.l.b16 %v1411
    %v1547 = vunpack.c.l.b16 %v1412
    %v1548 = vpack.c.b16 %v1485, %v1484
    %v1549 = vpack.c.b16 %v1487, %v1486
    %v1550 = vpack.c.b16 %v1489, %v1488
    %v1551 = vpack.c.b16 %v1491, %v1490
    %v1552 = vpack.c.b16 %v1493, %v1492
    %v1553 = vpack.c.b16 %v1495, %v1494
    %v1554 = vpack.c.b16 %v1497, %v1496
    %v1555 = vpack.c.b16 %v1499, %v1498
    %v1556 = vpack.c.b16 %v1501, %v1500
    %v1557 = vpack.c.b16 %v1503, %v1502
    %v1558 = vpack.c.b16 %v1505, %v1504
    %v1559 = vpack.c.b16 %v1507, %v1506
    %v1560 = vpack.c.b16 %v1509, %v1508
    %v1561 = vpack.c.b16 %v1511, %v1510
    %v1562 = vpack.c.b16 %v1513, %v1512
    %v1563 = vpack.c.b16 %v1515, %v1514
    %v1564 = vpack.c.b16 %v1517, %v1516
    %v1565 = vpack.c.b16 %v1519, %v1518
    %v1566 = vpack.c.b16 %v1521, %v1520
    %v1567 = vpack.c.b16 %v1523, %v1522
    %v1568 = vpack.c.b16 %v1525, %v1524
    %v1569 = vpack.c.b16 %v1527, %v1526
    %v1570 = vpack.c.b16 %v1529, %v1528
    %v1571 = vpack.c.b16 %v1531, %v1530
    %v1572 = vpack.c.b16 %v1533, %v1532
    %v1573 = vpack.c.b16 %v1535, %v1534
    %v1574 = vpack.c.b16 %v1537, %v1536
    %v1575 = vpack.c.b16 %v1539, %v1538
    %v1576 = vpack.c.b16 %v1541, %v1540
    %v1577 = vpack.c.b16 %v1543, %v1542
    %v1578 = vpack.c.b16 %v1545, %v1544
    %v1579 = vpack.c.b16 %v1547, %v1546
    %1612 = vmatprep.subr.bf16.mxu0 0
    %1613 = vmatpush1.bf16.msra.mxu0 %v1555
    %1614 = vmatprep.subr.bf16.mxu0 0
    %1615 = vmatpush1.bf16.msra.mxu0 %v1554
    %1616 = vmatprep.subr.bf16.mxu0 0
    %1617 = vmatpush1.bf16.msra.mxu0 %v1553
    %1618 = vmatprep.subr.bf16.mxu0 0
    %1619 = vmatpush1.bf16.msra.mxu0 %v1552
    %1620 = vmatprep.subr.bf16.mxu0 0
    %1621 = vmatpush1.bf16.msra.mxu0 %v1551
    %1622 = vmatprep.subr.bf16.mxu0 0
    %1623 = vmatpush1.bf16.msra.mxu0 %v1550
    %1624 = vmatprep.subr.bf16.mxu0 0
    %1625 = vmatpush1.bf16.msra.mxu0 %v1549
    %1626 = vmatprep.subr.bf16.mxu0 0
    %1627 = vmatpush1.bf16.msra.mxu0 %v1548
    %1628 = vmatprep.subr.bf16.mxu0 0
    %1629 = vmatpush2.bf16.msra.mxu0 %v1563
    %1630 = vmatprep.subr.bf16.mxu0 0
    %1631 = vmatpush2.bf16.msra.mxu0 %v1562
    %1632 = vmatprep.subr.bf16.mxu0 0
    %1633 = vmatpush2.bf16.msra.mxu0 %v1561
    %1634 = vmatprep.subr.bf16.mxu0 0
    %1635 = vmatpush2.bf16.msra.mxu0 %v1560
    %1636 = vmatprep.subr.bf16.mxu0 0
    %1637 = vmatpush2.bf16.msra.mxu0 %v1559
    %1638 = vmatprep.subr.bf16.mxu0 0
    %1639 = vmatpush2.bf16.msra.mxu0 %v1558
    %1640 = vmatprep.subr.bf16.mxu0 0
    %1641 = vmatpush2.bf16.msra.mxu0 %v1557
    %1642 = vmatprep.subr.bf16.mxu0 0
    %1643 = vmatpush2.bf16.msra.mxu0 %v1556
    %1644 = vmatprep.mubr.bf16.mxu0 %v1346
    %1645 = vmatmul.mubr.bf16.gmra.mxu0 %v1345
    %v1646 = vpop.f32.mrf.mxu0
    %v1647 = vadd.f32 %v1418, %v1646
    %v1648 = vpop.f32.mrf.mxu0
    %v1649 = vpop.f32.mrf.mxu0
    %v1650 = vpop.f32.mrf.mxu0
    %1651 = vdwg.mxu0
    %1652 = vmatprep.subr.bf16.mxu0 0
    %1653 = vmatpush1.bf16.msra.mxu0 %v1571
    %1654 = vmatprep.subr.bf16.mxu0 0
    %1655 = vmatpush1.bf16.msra.mxu0 %v1570
    %1656 = vmatprep.subr.bf16.mxu0 0
    %1657 = vmatpush1.bf16.msra.mxu0 %v1569
    %1658 = vmatprep.subr.bf16.mxu0 0
    %1659 = vmatpush1.bf16.msra.mxu0 %v1568
    %1660 = vmatprep.subr.bf16.mxu0 0
    %1661 = vmatpush1.bf16.msra.mxu0 %v1567
    %1662 = vmatprep.subr.bf16.mxu0 0
    %1663 = vmatpush1.bf16.msra.mxu0 %v1566
    %1664 = vmatprep.subr.bf16.mxu0 0
    %1665 = vmatpush1.bf16.msra.mxu0 %v1565
    %1666 = vmatprep.subr.bf16.mxu0 0
    %1667 = vmatpush1.bf16.msra.mxu0 %v1564
    %1668 = vmatprep.subr.bf16.mxu0 0
    %1669 = vmatpush2.bf16.msra.mxu0 %v1579
    %1670 = vmatprep.subr.bf16.mxu0 0
    %1671 = vmatpush2.bf16.msra.mxu0 %v1578
    %1672 = vmatprep.subr.bf16.mxu0 0
    %1673 = vmatpush2.bf16.msra.mxu0 %v1577
    %1674 = vmatprep.subr.bf16.mxu0 0
    %1675 = vmatpush2.bf16.msra.mxu0 %v1576
    %1676 = vmatprep.subr.bf16.mxu0 0
    %1677 = vmatpush2.bf16.msra.mxu0 %v1575
    %1678 = vmatprep.subr.bf16.mxu0 0
    %1679 = vmatpush2.bf16.msra.mxu0 %v1574
    %1680 = vmatprep.subr.bf16.mxu0 0
    %1681 = vmatpush2.bf16.msra.mxu0 %v1573
    %1682 = vmatprep.subr.bf16.mxu0 0
    %1683 = vmatpush2.bf16.msra.mxu0 %v1572
    %1684 = vmatprep.mubr.bf16.mxu0 %v1348
    %1685 = vmatmul.mubr.bf16.gmra.mxu0 %v1347
    %v1686 = vpop.f32.mrf.mxu0
    %v1687 = vadd.f32 %v1647, %v1686
    %v1688 = vpop.f32.mrf.mxu0
    %v1689 = vpop.f32.mrf.mxu0
    %v1690 = vpop.f32.mrf.mxu0
    %1691 = vdwg.mxu0
    %v1692 = vtanh.pop %v1687
    %v1693 = vpack.c.bf16 %v1692, %v1692
    %v1694 = vld [vmem:[%s9] sm:$0xf]
    %v1695 = vld [vmem:[%s9 + $0x4] sm:$0xf]
    %v1696 = vld [vmem:[%s9 + $0x8] sm:$0xf]
    %v1697 = vld [vmem:[%s9 + $0xc] sm:$0xf]
    %v1698 = vld [vmem:[%s9 + $0x10] sm:$0xf]
    %v1699 = vld [vmem:[%s9 + $0x14] sm:$0xf]
    %v1700 = vld [vmem:[%s9 + $0x18] sm:$0xf]
    %v1701 = vld [vmem:[%s9 + $0x1c] sm:$0xf]
    %v1702 = vld [vmem:[%s10] sm:$0x1]
    %v1704 = vlaneseq
    %v1705 = vshrl.u32 %v1704, 7
    %v1706 = vsub.s32 0, %v1705
    %v1707 = vrot.slane %v1702, %v1706
    %v1717 = vunpack.c.l.b16 %v1694
    %v1718 = vunpack.c.l.b16 %v1695
    %v1719 = vunpack.c.l.b16 %v1696
    %v1720 = vunpack.c.l.b16 %v1697
    %v1721 = vunpack.c.l.b16 %v1698
    %v1722 = vunpack.c.l.b16 %v1699
    %v1723 = vunpack.c.l.b16 %v1700
    %v1724 = vunpack.c.l.b16 %v1701
    %v1725 = vpack.c.b16 %v1718, %v1717
    %v1726 = vpack.c.b16 %v1720, %v1719
    %v1727 = vpack.c.b16 %v1722, %v1721
    %v1728 = vpack.c.b16 %v1724, %v1723
    %v1734 = vsel %vm824, %v1693, 0
    %1736 = vmatprep.subr.bf16.mxu0 0
    %1737 = vmatpush1.bf16.msra.mxu0 0
    %1738 = vmatprep.subr.bf16.mxu0 0
    %1739 = vmatpush1.bf16.msra.mxu0 0
    %1740 = vmatprep.subr.bf16.mxu0 0
    %1741 = vmatpush1.bf16.msra.mxu0 0
    %1742 = vmatprep.subr.bf16.mxu0 0
    %1743 = vmatpush1.bf16.msra.mxu0 0
    %1744 = vmatprep.subr.bf16.mxu0 0
    %1745 = vmatpush1.bf16.msra.mxu0 %v1728
    %1746 = vmatprep.subr.bf16.mxu0 0
    %1747 = vmatpush1.bf16.msra.mxu0 %v1727
    %1748 = vmatprep.subr.bf16.mxu0 0
    %1749 = vmatpush1.bf16.msra.mxu0 %v1726
    %1750 = vmatprep.subr.bf16.mxu0 0
    %1751 = vmatpush1.bf16.msra.mxu0 %v1725
    %1752 = vmatprep.subr.bf16.mxu0 0
    %1753 = vmatpush2.bf16.msra.mxu0 0
    %1754 = vmatprep.subr.bf16.mxu0 0
    %1755 = vmatpush2.bf16.msra.mxu0 0
    %1756 = vmatprep.subr.bf16.mxu0 0
    %1757 = vmatpush2.bf16.msra.mxu0 0
    %1758 = vmatprep.subr.bf16.mxu0 0
    %1759 = vmatpush2.bf16.msra.mxu0 0
    %1760 = vmatprep.subr.bf16.mxu0 0
    %1761 = vmatpush2.bf16.msra.mxu0 0
    %1762 = vmatprep.subr.bf16.mxu0 0
    %1763 = vmatpush2.bf16.msra.mxu0 0
    %1764 = vmatprep.subr.bf16.mxu0 0
    %1765 = vmatpush2.bf16.msra.mxu0 0
    %1766 = vmatprep.subr.bf16.mxu0 0
    %1767 = vmatpush2.bf16.msra.mxu0 0
    %1768 = vmatprep.mubr.bf16.mxu0 0
    %1769 = vmatmul.mubr.bf16.gmra.mxu0 %v1734
    %v1770 = vpop.f32.mrf.mxu0
    %v1771 = vadd.f32 %v1707, %v1770
    %v1772 = vpop.f32.mrf.mxu0
    %v1773 = vpop.f32.mrf.mxu0
    %v1774 = vpop.f32.mrf.mxu0
    %1775 = vdwg.mxu0
    %vm1776 = vcmask 58368
    %1777 = vst.msk [vmem:[#allocation2] sm:$0x3] %vm1776, %v1771
    // Predicated region
    $region46: #{tpu_custom_call.1} parent=1 // pred_check
      _
    $region47: #{tpu_custom_call.1} parent=1 // pred_check_branch
      %1779 = sbr.rel (0) target = $region49
    $region48: #{tpu_custom_call.1} parent=1 // pred_region
      %s1781 = ssub.s32 32, 32
      %1782 = vsyncadd [#allocation3], %s1781
      %s1784 = sshll.u32 [#allocation2], 4
      %s1785 = int_to_ptr.vmem [resolvable:$true] %s1784
      %1787 = dma.vmem_to_hbm [thread:$0]  %s1785, 32, %s11, [#allocation3]
    $region49: #{tpu_custom_call.1} parent=1 // pred_fallthru
      _
    // Predicated region
    $region50: #{tpu_custom_call.1} parent=1 // pred_check
      _
    $region51: #{tpu_custom_call.1} parent=1 // pred_check_branch
      %1789 = sbr.rel (0) target = $region53
    $region52: #{tpu_custom_call.1} parent=1 // pred_region
      %1790 = dma.done [#allocation3], 32
    $region53: #{tpu_custom_call.1} parent=1 // pred_fallthru
      _
    %1791 = vsyncpa [#allocation3], 1

</llo_original>
